<compile_context>
chip_gen: v7x
topology: tpu7x:2x2x1
jax: 0.10.0
libtpu: 0.0.40
codegen_flags: <defaults>
</compile_context>

<pallas_src>
import jax
import jax.numpy as jnp
from jax.experimental import pallas as pl
from jax.experimental.pallas import tpu as pltpu

# Fits comfortably inside v7x's 64 MiB physical VMEM (default scoped limit is 32 MiB)
# while letting larger-than-default blocks double-buffer on v5e/v6e (128 MiB).
_VMEM_LIMIT_BYTES = 48 * 1024 * 1024


def _pick_channel_block(channels: int) -> int:
    """Channel (lane) tile: a 128-lane multiple when possible, else all channels."""
    if channels % 128 == 0:
        return 128
    return channels


# ----------------------------- Pallas kernels -----------------------------

def _dw3x3_from_pad(h1pad_ref, wdw_ref, b2_ref):
    """3x3 depthwise conv (+ folded-BN bias) + ReLU6 over a zero-padded VMEM tile."""
    hp, wp, c = h1pad_ref.shape
    h, w = hp - 2, wp - 2
    # Init the accumulator with the bias (saves one full-tile VPU add at the end).
    acc = jnp.broadcast_to(b2_ref[...].reshape(1, 1, c), (h, w, c))
    for ki in range(3):
        for kj in range(3):
            tap = wdw_ref[ki * 3 + kj, :].reshape(1, 1, c)
            acc = acc + h1pad_ref[pl.ds(ki, h), pl.ds(kj, w), :] * tap
    return jnp.clip(acc, 0.0, 6.0)


def _expand_dw_kernel(x_ref, wexp_ref, b1_ref, wdw_ref, b2_ref, o_ref, h1pad_ref):
    """Fused 1x1 expand conv + BN + ReLU6  ->  3x3 depthwise conv + BN + ReLU6.

    Grid point = (batch n, channel block c).  h1 is produced and consumed entirely
    in VMEM; only the depthwise output is written back to HBM (as bf16).
    """
    _, h, w, cin = x_ref.shape
    cblk = o_ref.shape[-1]
    # 1x1 expand: (H*W, Cin) @ (Cin, cblk) on the MXU (bf16 inputs, f32 accumulate).
    x2 = x_ref[0].reshape(h * w, cin).astype(jnp.bfloat16)
    h1 = jnp.dot(x2, wexp_ref[...], preferred_element_type=jnp.float32)
    h1 = jnp.clip(h1 + b1_ref[...], 0.0, 6.0)
    # Zero-pad into VMEM scratch (the depthwise conv pads with zeros, NOT relu6(bias)).
    # Re-zeroed every grid step: cheap, and megacore-safe when the grid is core-sharded.
    h1pad_ref[...] = jnp.zeros_like(h1pad_ref)
    h1pad_ref[pl.ds(1, h), pl.ds(1, w), :] = h1.reshape(h, w, cblk)
    o_ref[0] = _dw3x3_from_pad(h1pad_ref, wdw_ref, b2_ref).astype(o_ref.dtype)


def _dw_only_kernel(x_ref, wdw_ref, b2_ref, o_ref, h1pad_ref):
    """expand_ratio == 1 path: depthwise 3x3 conv + BN + ReLU6 only."""
    _, h, w, _ = x_ref.shape
    h1pad_ref[...] = jnp.zeros_like(h1pad_ref)
    h1pad_ref[pl.ds(1, h), pl.ds(1, w), :] = x_ref[0].astype(jnp.float32)
    o_ref[0] = _dw3x3_from_pad(h1pad_ref, wdw_ref, b2_ref).astype(o_ref.dtype)


def _lift_energy_proj_kernel(h2_ref, weff_ref, wfin_ref, b3_ref, o_ref):
    """Fused Lifting_down + 1x1(4C->C) + Energy_attention + 1x1(C->oup) + BN.

    The block is one image, pre-reshaped to (1, H/2, 2, W/2, 2C) so the 2x2 parity
    de-interleave is major-dim indexing plus a static lane split:
      [..., 0, :, :C] = x_ee   [..., 0, :, C:] = x_eo
      [..., 1, :, :C] = x_oe   [..., 1, :, C:] = x_oo
    The Haar lifting is linear and already folded into weff, so lifting+projection
    is a single K=4C MXU matmul over [x_ee | x_eo | x_oe | x_oo].
    """
    _, h2, _, w2, c2 = h2_ref.shape
    c = c2 // 2
    oup = o_ref.shape[-1]
    v = h2_ref[...]
    row_e = v[0, :, 0, :, :]                                 # (H2, W2, 2C)
    row_o = v[0, :, 1, :, :]
    z = jnp.concatenate([row_e, row_o], axis=-1).reshape(h2 * w2, 4 * c)
    y = jnp.dot(z, weff_ref[...], preferred_element_type=jnp.float32)   # (M2, C) f32
    # Energy attention: sigmoid of the per-channel mean spatial energy of this image.
    e = jnp.mean(y * y, axis=0, keepdims=True)               # (1, C)
    a = jax.nn.sigmoid(e)
    ya = (y * a).astype(jnp.bfloat16)
    out = jnp.dot(ya, wfin_ref[...], preferred_element_type=jnp.float32) + b3_ref[...]
    o_ref[...] = out.reshape(1, h2, w2, oup).astype(o_ref.dtype)


# ------------------------------- wrapper -------------------------------

def inverted_residual_ldw_forward_nhwc(x_nhwc, params):
    """Forward pass, NHWC in / NHWC out (preferred entry: no boundary transposes)."""
    n, h, w, cin = x_nhwc.shape
    assert h % 2 == 0 and w % 2 == 0, "Lifting_down needs even spatial dims"
    hidden = params["w_dw_f"].shape[-1]
    oup = params["w_final_f"].shape[-1]
    h2d, w2d = h // 2, w // 2

    x = x_nhwc.astype(jnp.float32)
    cblk = _pick_channel_block(hidden)
    n_cblk = hidden // cblk

    wdw9 = params["w_dw_f"].reshape(9, hidden)
    b2 = params["b2"].reshape(1, hidden)

    # ---- Kernel A: (optional) expand + depthwise; h1 never leaves VMEM ----
    if params["w_exp_bf16"] is not None:
        h2 = pl.pallas_call(
            _expand_dw_kernel,
            out_shape=jax.ShapeDtypeStruct((n, h, w, hidden), jnp.bfloat16),
            grid=(n, n_cblk),
            in_specs=[
                pl.BlockSpec((1, h, w, cin), lambda i, c: (i, 0, 0, 0)),
                pl.BlockSpec((cin, cblk), lambda i, c: (0, c)),
                pl.BlockSpec((1, cblk), lambda i, c: (0, c)),
                pl.BlockSpec((9, cblk), lambda i, c: (0, c)),
                pl.BlockSpec((1, cblk), lambda i, c: (0, c)),
            ],
            out_specs=pl.BlockSpec((1, h, w, cblk), lambda i, c: (i, 0, 0, c)),
            scratch_shapes=[pltpu.VMEM((h + 2, w + 2, cblk), jnp.float32)],
            compiler_params=pltpu.CompilerParams(
                dimension_semantics=("parallel", "parallel"),
                vmem_limit_bytes=_VMEM_LIMIT_BYTES),
        )(x, params["w_exp_bf16"], params["b1"].reshape(1, hidden), wdw9, b2)
    else:
        h2 = pl.pallas_call(
            _dw_only_kernel,
            out_shape=jax.ShapeDtypeStruct((n, h, w, hidden), jnp.bfloat16),
            grid=(n, n_cblk),
            in_specs=[
                pl.BlockSpec((1, h, w, cblk), lambda i, c: (i, 0, 0, c)),
                pl.BlockSpec((9, cblk), lambda i, c: (0, c)),
                pl.BlockSpec((1, cblk), lambda i, c: (0, c)),
            ],
            out_specs=pl.BlockSpec((1, h, w, cblk), lambda i, c: (i, 0, 0, c)),
            scratch_shapes=[pltpu.VMEM((h + 2, w + 2, cblk), jnp.float32)],
            compiler_params=pltpu.CompilerParams(
                dimension_semantics=("parallel", "parallel"),
                vmem_limit_bytes=_VMEM_LIMIT_BYTES),
        )(x, wdw9, b2)

    # Row-major-compatible view: (N,H,W,C) -> (N, H/2, 2, W/2, 2C).  The 2x2 parity
    # de-interleave then happens inside kernel B (no strided HBM scatter/gather).
    h2r = h2.reshape(n, h2d, 2, w2d, 2 * hidden)

    # ---- Kernel B: lifting + projection + energy attention + final 1x1 + BN ----
    out_nhwc = pl.pallas_call(
        _lift_energy_proj_kernel,
        out_shape=jax.ShapeDtypeStruct((n, h2d, w2d, oup), jnp.float32),
        grid=(n,),
        in_specs=[
            pl.BlockSpec((1, h2d, 2, w2d, 2 * hidden), lambda i: (i, 0, 0, 0, 0)),
            pl.BlockSpec((4 * hidden, hidden), lambda i: (0, 0)),
            pl.BlockSpec((hidden, oup), lambda i: (0, 0)),
            pl.BlockSpec((1, oup), lambda i: (0, 0)),
        ],
        out_specs=pl.BlockSpec((1, h2d, w2d, oup), lambda i: (i, 0, 0, 0)),
        compiler_params=pltpu.CompilerParams(
            dimension_semantics=("parallel",),
            vmem_limit_bytes=_VMEM_LIMIT_BYTES),
    )(h2r, params["w_lift_eff_bf16"], params["w_final_bf16"],
      params["b3"].reshape(1, oup))

    # Residual connection (stride == 1 and inp == oup).  Lifting_down halves the
    # spatial dims, so it only applies when shapes actually match.
    # TODO(synk): upstream Lifting_down may preserve resolution; unverified.
    if params["use_res_connect"] and out_nhwc.shape == x_nhwc.shape:
        out_nhwc = out_nhwc + x_nhwc
    return out_nhwc


def inverted_residual_ldw_forward(x_nchw, params):
    """PyTorch-convention NCHW wrapper (one transpose in, one out)."""
    x_nhwc = jnp.transpose(x_nchw, (0, 2, 3, 1))
    out_nhwc = inverted_residual_ldw_forward_nhwc(x_nhwc, params)
    return jnp.transpose(out_nhwc, (0, 3, 1, 2))


# ------------------------------- parameters -------------------------------

def _fold_bn(gamma, beta, mean, var, eps=1e-5):
    s = gamma / jnp.sqrt(var + eps)
    return s, beta - mean * s


def _fold_lifting_into_proj(w_lift_proj):
    """Fold the (linear) Haar predict/update lifting into the 4C->C projection.

    For a 2x2 block (x_ee, x_eo, x_oe, x_oo):
        ll = 0.25 ( x_ee + x_eo + x_oe + x_oo)
        lh = 0.5  (-x_ee + x_eo - x_oe + x_oo)
        hl = 0.5  (-x_ee - x_eo + x_oe + x_oo)
        hh =        x_ee - x_eo - x_oe + x_oo
    so  [ll lh hl hh] @ W  ==  [x_ee x_eo x_oe x_oo] @ W_eff.
    """
    c = w_lift_proj.shape[1]
    w0, w1, w2, w3 = (w_lift_proj[i * c:(i + 1) * c] for i in range(4))
    wee = 0.25 * w0 - 0.5 * w1 - 0.5 * w2 + w3
    weo = 0.25 * w0 + 0.5 * w1 - 0.5 * w2 - w3
    woe = 0.25 * w0 - 0.5 * w1 + 0.5 * w2 - w3
    woo = 0.25 * w0 + 0.5 * w1 + 0.5 * w2 + w3
    return jnp.concatenate([wee, weo, woe, woo], axis=0)


def make_params(key, inp, oup, stride, expand_ratio):
    hidden = int(round(inp * expand_ratio))
    ks = jax.random.split(key, 8)

    def nrm(k, shape, scale=0.2):
        return scale * jax.random.normal(k, shape, jnp.float32)

    def bn(k, c):
        k1, k2, k3, k4 = jax.random.split(k, 4)
        gamma = 1.0 + 0.1 * jax.random.normal(k1, (c,), jnp.float32)
        beta = 0.1 * jax.random.normal(k2, (c,), jnp.float32)
        mean = 0.1 * jax.random.normal(k3, (c,), jnp.float32)
        var = jax.random.uniform(k4, (c,), jnp.float32, 0.5, 1.5)
        return gamma, beta, mean, var

    params = {"use_res_connect": (stride == 1 and inp == oup)}

    if expand_ratio != 1:
        w_exp = nrm(ks[0], (inp, hidden))                         # 1x1 conv, no bias
        s1, b1 = _fold_bn(*bn(ks[1], hidden))
        params["w_exp_f"] = w_exp * s1[None, :]
        params["w_exp_bf16"] = params["w_exp_f"].astype(jnp.bfloat16)
        params["b1"] = b1
    else:
        params["w_exp_f"] = None
        params["w_exp_bf16"] = None
        params["b1"] = None

    w_dw = nrm(ks[2], (3, 3, hidden))                             # depthwise 3x3
    s2, b2 = _fold_bn(*bn(ks[3], hidden))
    params["w_dw_f"] = w_dw * s2[None, None, :]
    params["b2"] = b2

    params["w_lift_proj"] = nrm(ks[4], (4 * hidden, hidden))      # 1x1, no bias
    params["w_lift_eff_bf16"] = _fold_lifting_into_proj(
        params["w_lift_proj"]).astype(jnp.bfloat16)

    w_final = nrm(ks[5], (hidden, oup))                           # 1x1, no bias
    s3, b3 = _fold_bn(*bn(ks[6], oup))
    params["w_final_f"] = w_final * s3[None, :]
    params["w_final_bf16"] = params["w_final_f"].astype(jnp.bfloat16)
    params["b3"] = b3
    return params


# ------------------------- pure-JAX f32 reference -------------------------

def reference_forward_nhwc(x, p):
    """Pure-JAX f32 reference (same guessed Lifting_down / Energy_attention)."""
    _, h, w, _ = x.shape
    if p["w_exp_f"] is not None:
        h1 = jnp.clip(jnp.einsum("nhwc,cd->nhwd", x, p["w_exp_f"]) + p["b1"], 0.0, 6.0)
    else:
        h1 = x
    h1p = jnp.pad(h1, ((0, 0), (1, 1), (1, 1), (0, 0)))
    acc = jnp.zeros_like(h1)
    for ki in range(3):
        for kj in range(3):
            acc = acc + h1p[:, ki:ki + h, kj:kj + w, :] * p["w_dw_f"][ki, kj][None, None, None, :]
    h2 = jnp.clip(acc + p["b2"], 0.0, 6.0)
    xee, xeo = h2[:, 0::2, 0::2, :], h2[:, 0::2, 1::2, :]
    xoe, xoo = h2[:, 1::2, 0::2, :], h2[:, 1::2, 1::2, :]
    d_e = xoe - xee
    c_e = xee + 0.5 * d_e
    d_o = xoo - xeo
    c_o = xeo + 0.5 * d_o
    lh = c_o - c_e
    ll = c_e + 0.5 * lh
    hh = d_o - d_e
    hl = d_e + 0.5 * hh
    sub = jnp.concatenate([ll, lh, hl, hh], axis=-1)
    y = jnp.einsum("nhwc,cd->nhwd", sub, p["w_lift_proj"])
    e = jnp.mean(y * y, axis=(1, 2), keepdims=True)
    out = jnp.einsum("nhwc,cd->nhwd", y * jax.nn.sigmoid(e), p["w_final_f"]) + p["b3"]
    if p["use_res_connect"] and out.shape == x.shape:
        out = out + x
    return out


if __name__ == "__main__":
    inp, oup, stride, expand_ratio = 4, 8, 1, 2
    N, H, W = 2, 16, 16

    key = jax.random.PRNGKey(0)
    kp, kx = jax.random.split(key)
    params = make_params(kp, inp, oup, stride, expand_ratio)
    x = jax.random.normal(kx, (N, inp, H, W), jnp.float32)     # NCHW like PyTorch

    out = inverted_residual_ldw_forward(x, params)
    out = jax.block_until_ready(out)

    assert out.shape == (N, oup, H // 2, W // 2), out.shape
    assert bool(jnp.all(jnp.isfinite(out)))

    # Loose sanity check vs the f32 pure-JAX reference (kernels use bf16 MXU inputs).
    ref = reference_forward_nhwc(jnp.transpose(x, (0, 2, 3, 1)), params)
    ref = jnp.transpose(ref, (0, 3, 1, 2))
    max_err = float(jnp.max(jnp.abs(out - ref)))
    assert max_err < 0.3, f"max abs err vs f32 reference too large: {max_err}"

    print("KERNEL_OK")
</pallas_src>

<mosaic_0001>
module attributes {stable_mosaic.version = 11 : i64} {
  func.func @_expand_dw_kernel(%arg0: i32, %arg1: i32, %arg2: memref<1x16x16x4xf32, #tpu.memory_space<vmem>>, %arg3: memref<4x8xbf16, #tpu.memory_space<vmem>>, %arg4: memref<1x8xf32, #tpu.memory_space<vmem>>, %arg5: memref<9x8xf32, #tpu.memory_space<vmem>>, %arg6: memref<1x8xf32, #tpu.memory_space<vmem>>, %arg7: memref<1x16x16x8xbf16, #tpu.memory_space<vmem>>, %arg8: memref<18x18x8xf32, #tpu.memory_space<vmem>>) attributes {dimension_semantics = [#tpu.dimension_semantics<parallel>, #tpu.dimension_semantics<parallel>], iteration_bounds = array<i64: 2, 1>, scalar_prefetch = 0 : i64, scratch_operands = 1 : i64, tpu.core_type = #tpu.core_type<tc>, window_params = [{transform_indices = @transform_0, window_bounds = array<i64: 1, 16, 16, 4>}, {transform_indices = @transform_1, window_bounds = array<i64: 4, 8>}, {transform_indices = @transform_2, window_bounds = array<i64: 1, 8>}, {transform_indices = @transform_3, window_bounds = array<i64: 9, 8>}, {transform_indices = @transform_4, window_bounds = array<i64: 1, 8>}, {transform_indices = @transform_5, window_bounds = array<i64: 1, 16, 16, 8>}]} {
    %c0 = arith.constant 0 : index
    %c0_0 = arith.constant 0 : index
    %c0_1 = arith.constant 0 : index
    %c0_2 = arith.constant 0 : index
    %0 = vector.load %arg2[%c0, %c0_0, %c0_1, %c0_2] : memref<1x16x16x4xf32, #tpu.memory_space<vmem>>, vector<1x16x16x4xf32>
    %1 = vector.shape_cast %0 : vector<1x16x16x4xf32> to vector<16x16x4xf32>
    %2 = vector.shape_cast %1 : vector<16x16x4xf32> to vector<256x4xf32>
    %3 = arith.truncf %2 : vector<256x4xf32> to vector<256x4xbf16>
    %c0_3 = arith.constant 0 : index
    %c0_4 = arith.constant 0 : index
    %4 = vector.load %arg3[%c0_3, %c0_4] : memref<4x8xbf16, #tpu.memory_space<vmem>>, vector<4x8xbf16>
    %cst = arith.constant dense<0.000000e+00> : vector<256x8xf32>
    %5 = tpu.matmul %3, %4, %cst {dimension_numbers = #tpu.dot_dimension_numbers<[1], [0], [0], [1], [0, 0, 1, 1], [], []>} : vector<256x4xbf16>, vector<4x8xbf16>, vector<256x8xf32> -> vector<256x8xf32>
    %c0_5 = arith.constant 0 : index
    %c0_6 = arith.constant 0 : index
    %6 = vector.load %arg4[%c0_5, %c0_6] : memref<1x8xf32, #tpu.memory_space<vmem>>, vector<1x8xf32>
    %7 = vector.broadcast %6 : vector<1x8xf32> to vector<256x8xf32>
    %8 = arith.addf %5, %7 : vector<256x8xf32>
    %cst_7 = arith.constant 0.000000e+00 : f32
    %cst_8 = arith.constant 6.000000e+00 : f32
    %9 = vector.broadcast %cst_7 : f32 to vector<256x8xf32>
    %10 = arith.maximumf %9, %8 : vector<256x8xf32>
    %11 = vector.broadcast %cst_8 : f32 to vector<256x8xf32>
    %12 = arith.minimumf %11, %10 : vector<256x8xf32>
    %cst_9 = arith.constant 0.000000e+00 : f32
    %13 = vector.broadcast %cst_9 : f32 to vector<18x18x8xf32>
    %c0_10 = arith.constant 0 : index
    %c0_11 = arith.constant 0 : index
    %c0_12 = arith.constant 0 : index
    %14 = vector.load %arg8[%c0_10, %c0_11, %c0_12] : memref<18x18x8xf32, #tpu.memory_space<vmem>>, vector<18x18x8xf32>
    tpu.vector_store %arg8[%c0_10, %c0_11, %c0_12], %13 {strides = array<i32>} : memref<18x18x8xf32, #tpu.memory_space<vmem>>, vector<18x18x8xf32>,
    %15 = vector.shape_cast %12 : vector<256x8xf32> to vector<16x16x8xf32>
    %c1 = arith.constant 1 : index
    %c1_13 = arith.constant 1 : index
    %c0_14 = arith.constant 0 : index
    %16 = vector.load %arg8[%c1, %c1_13, %c0_14] : memref<18x18x8xf32, #tpu.memory_space<vmem>>, vector<16x16x8xf32>
    tpu.vector_store %arg8[%c1, %c1_13, %c0_14], %15 {strides = array<i32>} : memref<18x18x8xf32, #tpu.memory_space<vmem>>, vector<16x16x8xf32>,
    %c0_15 = arith.constant 0 : index
    %c0_16 = arith.constant 0 : index
    %17 = vector.load %arg6[%c0_15, %c0_16] : memref<1x8xf32, #tpu.memory_space<vmem>>, vector<1x8xf32>
    %18 = vector.shape_cast %17 : vector<1x8xf32> to vector<1x1x8xf32>
    %19 = vector.shape_cast %18 : vector<1x1x8xf32> to vector<1x1x8xf32>
    %20 = vector.broadcast %19 : vector<1x1x8xf32> to vector<16x16x8xf32>
    %c0_17 = arith.constant 0 : index
    %c0_18 = arith.constant 0 : index
    %21 = vector.load %arg5[%c0_17, %c0_18] : memref<9x8xf32, #tpu.memory_space<vmem>>, vector<1x8xf32>
    %22 = vector.shape_cast %21 : vector<1x8xf32> to vector<8xf32>
    %23 = vector.shape_cast %22 : vector<8xf32> to vector<1x1x8xf32>
    %c0_19 = arith.constant 0 : index
    %c0_20 = arith.constant 0 : index
    %c0_21 = arith.constant 0 : index
    %24 = vector.load %arg8[%c0_19, %c0_20, %c0_21] : memref<18x18x8xf32, #tpu.memory_space<vmem>>, vector<16x16x8xf32>
    %25 = vector.broadcast %23 : vector<1x1x8xf32> to vector<16x16x8xf32>
    %26 = arith.mulf %24, %25 : vector<16x16x8xf32>
    %27 = arith.addf %20, %26 : vector<16x16x8xf32>
    %c1_22 = arith.constant 1 : index
    %c0_23 = arith.constant 0 : index
    %28 = vector.load %arg5[%c1_22, %c0_23] : memref<9x8xf32, #tpu.memory_space<vmem>>, vector<1x8xf32>
    %29 = vector.shape_cast %28 : vector<1x8xf32> to vector<8xf32>
    %30 = vector.shape_cast %29 : vector<8xf32> to vector<1x1x8xf32>
    %c0_24 = arith.constant 0 : index
    %c1_25 = arith.constant 1 : index
    %c0_26 = arith.constant 0 : index
    %31 = vector.load %arg8[%c0_24, %c1_25, %c0_26] : memref<18x18x8xf32, #tpu.memory_space<vmem>>, vector<16x16x8xf32>
    %32 = vector.broadcast %30 : vector<1x1x8xf32> to vector<16x16x8xf32>
    %33 = arith.mulf %31, %32 : vector<16x16x8xf32>
    %34 = arith.addf %27, %33 : vector<16x16x8xf32>
    %c2 = arith.constant 2 : index
    %c0_27 = arith.constant 0 : index
    %35 = vector.load %arg5[%c2, %c0_27] : memref<9x8xf32, #tpu.memory_space<vmem>>, vector<1x8xf32>
    %36 = vector.shape_cast %35 : vector<1x8xf32> to vector<8xf32>
    %37 = vector.shape_cast %36 : vector<8xf32> to vector<1x1x8xf32>
    %c0_28 = arith.constant 0 : index
    %c2_29 = arith.constant 2 : index
    %c0_30 = arith.constant 0 : index
    %38 = vector.load %arg8[%c0_28, %c2_29, %c0_30] : memref<18x18x8xf32, #tpu.memory_space<vmem>>, vector<16x16x8xf32>
    %39 = vector.broadcast %37 : vector<1x1x8xf32> to vector<16x16x8xf32>
    %40 = arith.mulf %38, %39 : vector<16x16x8xf32>
    %41 = arith.addf %34, %40 : vector<16x16x8xf32>
    %c3 = arith.constant 3 : index
    %c0_31 = arith.constant 0 : index
    %42 = vector.load %arg5[%c3, %c0_31] : memref<9x8xf32, #tpu.memory_space<vmem>>, vector<1x8xf32>
    %43 = vector.shape_cast %42 : vector<1x8xf32> to vector<8xf32>
    %44 = vector.shape_cast %43 : vector<8xf32> to vector<1x1x8xf32>
    %c1_32 = arith.constant 1 : index
    %c0_33 = arith.constant 0 : index
    %c0_34 = arith.constant 0 : index
    %45 = vector.load %arg8[%c1_32, %c0_33, %c0_34] : memref<18x18x8xf32, #tpu.memory_space<vmem>>, vector<16x16x8xf32>
    %46 = vector.broadcast %44 : vector<1x1x8xf32> to vector<16x16x8xf32>
    %47 = arith.mulf %45, %46 : vector<16x16x8xf32>
    %48 = arith.addf %41, %47 : vector<16x16x8xf32>
    %c4 = arith.constant 4 : index
    %c0_35 = arith.constant 0 : index
    %49 = vector.load %arg5[%c4, %c0_35] : memref<9x8xf32, #tpu.memory_space<vmem>>, vector<1x8xf32>
    %50 = vector.shape_cast %49 : vector<1x8xf32> to vector<8xf32>
    %51 = vector.shape_cast %50 : vector<8xf32> to vector<1x1x8xf32>
    %c1_36 = arith.constant 1 : index
    %c1_37 = arith.constant 1 : index
    %c0_38 = arith.constant 0 : index
    %52 = vector.load %arg8[%c1_36, %c1_37, %c0_38] : memref<18x18x8xf32, #tpu.memory_space<vmem>>, vector<16x16x8xf32>
    %53 = vector.broadcast %51 : vector<1x1x8xf32> to vector<16x16x8xf32>
    %54 = arith.mulf %52, %53 : vector<16x16x8xf32>
    %55 = arith.addf %48, %54 : vector<16x16x8xf32>
    %c5 = arith.constant 5 : index
    %c0_39 = arith.constant 0 : index
    %56 = vector.load %arg5[%c5, %c0_39] : memref<9x8xf32, #tpu.memory_space<vmem>>, vector<1x8xf32>
    %57 = vector.shape_cast %56 : vector<1x8xf32> to vector<8xf32>
    %58 = vector.shape_cast %57 : vector<8xf32> to vector<1x1x8xf32>
    %c1_40 = arith.constant 1 : index
    %c2_41 = arith.constant 2 : index
    %c0_42 = arith.constant 0 : index
    %59 = vector.load %arg8[%c1_40, %c2_41, %c0_42] : memref<18x18x8xf32, #tpu.memory_space<vmem>>, vector<16x16x8xf32>
    %60 = vector.broadcast %58 : vector<1x1x8xf32> to vector<16x16x8xf32>
    %61 = arith.mulf %59, %60 : vector<16x16x8xf32>
    %62 = arith.addf %55, %61 : vector<16x16x8xf32>
    %c6 = arith.constant 6 : index
    %c0_43 = arith.constant 0 : index
    %63 = vector.load %arg5[%c6, %c0_43] : memref<9x8xf32, #tpu.memory_space<vmem>>, vector<1x8xf32>
    %64 = vector.shape_cast %63 : vector<1x8xf32> to vector<8xf32>
    %65 = vector.shape_cast %64 : vector<8xf32> to vector<1x1x8xf32>
    %c2_44 = arith.constant 2 : index
    %c0_45 = arith.constant 0 : index
    %c0_46 = arith.constant 0 : index
    %66 = vector.load %arg8[%c2_44, %c0_45, %c0_46] : memref<18x18x8xf32, #tpu.memory_space<vmem>>, vector<16x16x8xf32>
    %67 = vector.broadcast %65 : vector<1x1x8xf32> to vector<16x16x8xf32>
    %68 = arith.mulf %66, %67 : vector<16x16x8xf32>
    %69 = arith.addf %62, %68 : vector<16x16x8xf32>
    %c7 = arith.constant 7 : index
    %c0_47 = arith.constant 0 : index
    %70 = vector.load %arg5[%c7, %c0_47] : memref<9x8xf32, #tpu.memory_space<vmem>>, vector<1x8xf32>
    %71 = vector.shape_cast %70 : vector<1x8xf32> to vector<8xf32>
    %72 = vector.shape_cast %71 : vector<8xf32> to vector<1x1x8xf32>
    %c2_48 = arith.constant 2 : index
    %c1_49 = arith.constant 1 : index
    %c0_50 = arith.constant 0 : index
    %73 = vector.load %arg8[%c2_48, %c1_49, %c0_50] : memref<18x18x8xf32, #tpu.memory_space<vmem>>, vector<16x16x8xf32>
    %74 = vector.broadcast %72 : vector<1x1x8xf32> to vector<16x16x8xf32>
    %75 = arith.mulf %73, %74 : vector<16x16x8xf32>
    %76 = arith.addf %69, %75 : vector<16x16x8xf32>
    %c8 = arith.constant 8 : index
    %c0_51 = arith.constant 0 : index
    %77 = vector.load %arg5[%c8, %c0_51] : memref<9x8xf32, #tpu.memory_space<vmem>>, vector<1x8xf32>
    %78 = vector.shape_cast %77 : vector<1x8xf32> to vector<8xf32>
    %79 = vector.shape_cast %78 : vector<8xf32> to vector<1x1x8xf32>
    %c2_52 = arith.constant 2 : index
    %c2_53 = arith.constant 2 : index
    %c0_54 = arith.constant 0 : index
    %80 = vector.load %arg8[%c2_52, %c2_53, %c0_54] : memref<18x18x8xf32, #tpu.memory_space<vmem>>, vector<16x16x8xf32>
    %81 = vector.broadcast %79 : vector<1x1x8xf32> to vector<16x16x8xf32>
    %82 = arith.mulf %80, %81 : vector<16x16x8xf32>
    %83 = arith.addf %76, %82 : vector<16x16x8xf32>
    %cst_55 = arith.constant 0.000000e+00 : f32
    %cst_56 = arith.constant 6.000000e+00 : f32
    %84 = vector.broadcast %cst_55 : f32 to vector<16x16x8xf32>
    %85 = arith.maximumf %84, %83 : vector<16x16x8xf32>
    %86 = vector.broadcast %cst_56 : f32 to vector<16x16x8xf32>
    %87 = arith.minimumf %86, %85 : vector<16x16x8xf32>
    %88 = arith.truncf %87 : vector<16x16x8xf32> to vector<16x16x8xbf16>
    %c0_57 = arith.constant 0 : index
    %c0_58 = arith.constant 0 : index
    %c0_59 = arith.constant 0 : index
    %c0_60 = arith.constant 0 : index
    %89 = vector.load %arg7[%c0_57, %c0_58, %c0_59, %c0_60] : memref<1x16x16x8xbf16, #tpu.memory_space<vmem>>, vector<1x16x16x8xbf16>
    %90 = vector.shape_cast %89 : vector<1x16x16x8xbf16> to vector<16x16x8xbf16>
    %91 = vector.shape_cast %88 : vector<16x16x8xbf16> to vector<1x16x16x8xbf16>
    tpu.vector_store %arg7[%c0_57, %c0_58, %c0_59, %c0_60], %91 {strides = array<i32>} : memref<1x16x16x8xbf16, #tpu.memory_space<vmem>>, vector<1x16x16x8xbf16>,
    return
  }
  func.func @transform_0(%arg0: i32, %arg1: i32) -> (i32, i32, i32, i32) {
    %c0_i32 = arith.constant 0 : i32
    %c0_i32_0 = arith.constant 0 : i32
    %c0_i32_1 = arith.constant 0 : i32
    %c0_i32_2 = arith.constant 0 : i32
    return %arg0, %c0_i32, %c0_i32_0, %c0_i32_1 : i32, i32, i32, i32
  }
  func.func @transform_1(%arg0: i32, %arg1: i32) -> (i32, i32) {
    %c0_i32 = arith.constant 0 : i32
    %c0_i32_0 = arith.constant 0 : i32
    return %c0_i32, %arg1 : i32, i32
  }
  func.func @transform_2(%arg0: i32, %arg1: i32) -> (i32, i32) {
    %c0_i32 = arith.constant 0 : i32
    %c0_i32_0 = arith.constant 0 : i32
    return %c0_i32, %arg1 : i32, i32
  }
  func.func @transform_3(%arg0: i32, %arg1: i32) -> (i32, i32) {
    %c0_i32 = arith.constant 0 : i32
    %c0_i32_0 = arith.constant 0 : i32
    return %c0_i32, %arg1 : i32, i32
  }
  func.func @transform_4(%arg0: i32, %arg1: i32) -> (i32, i32) {
    %c0_i32 = arith.constant 0 : i32
    %c0_i32_0 = arith.constant 0 : i32
    return %c0_i32, %arg1 : i32, i32
  }
  func.func @transform_5(%arg0: i32, %arg1: i32) -> (i32, i32, i32, i32) {
    %c0_i32 = arith.constant 0 : i32
    %c0_i32_0 = arith.constant 0 : i32
    %c0_i32_1 = arith.constant 0 : i32
    return %arg0, %c0_i32, %c0_i32_0, %arg1 : i32, i32, i32, i32
  }
}

</mosaic_0001>

<llo_original>
// kernel: tpu_custom_call.1
$region0: #{tpu_custom_call.1}
  #allocation0 [shape = 'u32[]', space=smem, size = 0x4, offset = 0x4, fixed_abs, tag = 'smem constant byte address 0x4 - core index']
  #allocation1 [shape = 'u32[144,128]{1,0:T(1,128)}', space=vmem, size = 0x12000, scoped, tag = 'internal scratch']
  #allocation2 [shape = 'f32[18,18,8]{2,1,0:T(8,128)}', space=vmem, size = 0x36000, scoped, tag = 'scratch operand']
  %s0 = inlined_call_operand.vmem [shape: f32[2,16,16,4], index: 0, kind: input, shape index: {}]
  %s1 = inlined_call_operand.vmem [shape: bf16[4,8], index: 1, kind: input, shape index: {}]
  %s2 = inlined_call_operand.vmem [shape: f32[1,8], index: 2, kind: input, shape index: {}]
  %s3 = inlined_call_operand.vmem [shape: f32[9,8], index: 3, kind: input, shape index: {}]
  %s4 = inlined_call_operand.vmem [shape: f32[1,8], index: 4, kind: input, shape index: {}]
  %s5 = inlined_call_operand.vmem [shape: bf16[2,16,16,8], index: 5, kind: output, shape index: {}]
  %s6 = sld [smem:[#allocation0]]
  $region53: #{tpu_custom_call.1} parent=0
    _
  %s8 = ssub.s32 1, %s6
  %s9 = scalar_select 0, %s8, %s6
  loop: start=0, step=1, limit=4
  $region2: #{tpu_custom_call.1} parent=0 // loop_pre_header
    _
  $region3: #{tpu_custom_call.1} parent=0 // loop_header
    %s11 = sphi 0, %s15
    %p12 = scmp.ge.s32.totalorder %s11, 4
    %s18 = sphi 0, %s30
    %s19 = sphi 0, %s26
    %s20 = sphi 0, %s18
    %s21 = sphi 0, %s19
    %s22 = sphi 0, %s20
    %s23 = sphi 0, %s21
    %s33 = sphi 0, %s35
    %s36 = sphi 0, %s33
    %s37 = sphi 0, %s36
    %s53 = sphi 0, %s37
    %s59 = sphi 0, %s61
    %s62 = sphi 0, %s59
    %s63 = sphi 0, %s62
    %s79 = sphi 0, %s63
    %s85 = sphi 0, %s87
    %s88 = sphi 0, %s85
    %s89 = sphi 0, %s88
    %s105 = sphi 0, %s89
    %s111 = sphi 0, %s113
    %s114 = sphi 0, %s111
    %s115 = sphi 0, %s114
    %s131 = sphi 0, %s115
    %s137 = sphi 0, %s139
    %s140 = sphi 0, %s137
    %s141 = sphi 0, %s140
    %s157 = sphi 0, %s141
    %s165 = sphi 0, %s167
    %s168 = sphi 0, %s165
    %s169 = sphi 0, %s168
    %s185 = sphi 0, %s169
  $region4: #{tpu_custom_call.1} parent=0 // loop_header_branch
    %14 = sbr.rel (%p12) target = $region8
  $region5: #{tpu_custom_call.1} parent=0 // loop_body
    %s16 = ssub.s32 %s11, 1
    %s17 = ssub.s32 %s11, 2
    %s24 = sadd.s32 1, %s19
    %p25 = scmp.ge.s32.totalorder %s24, 1
    %s26 = scalar_select %p25, 0, %s24
    %s27 = sadd.s32 1, %s18
    %s28 = scalar_select %p25, %s27, %s18
    %p29 = scmp.ge.s32.totalorder %s28, 2
    %s30 = scalar_select %p29, 0, %s28
    %s31 = ssub.s32 %s18, %s30
    %p32 = scmp.eq.s32.totalorder %s31, 0
    %s34 = sadd.s32 %s33, 1
    %s35 = scalar_select %p32, %s33, %s34
    %p38 = pneg %p32
    %p39 = scmp.eq.s32.totalorder %s11, 1
    %p40 = por %p38, %p39
    %p41 = scmp.ne.s32.totalorder %s33, %s36
    %p42 = scmp.eq.s32.totalorder %s11, 0
    %p43 = por %p41, %p42
    %p44 = scmp.ne.s32.totalorder %s33, %s36
    %p45 = scmp.eq.s32.totalorder %s16, 1
    %p46 = por %p44, %p45
    %p47 = scmp.ne.s32.totalorder %s36, %s37
    %p48 = scmp.eq.s32.totalorder %s16, 0
    %p49 = por %p47, %p48
    %p50 = scmp.ne.s32.totalorder %s36, %s37
    %p51 = scmp.eq.s32.totalorder %s17, 1
    %p52 = por %p50, %p51
    %p54 = scmp.ne.s32.totalorder %s37, %s53
    %p55 = scmp.eq.s32.totalorder %s17, 0
    %p56 = por %p54, %p55
    %s57 = ssub.s32 %s19, %s26
    %p58 = scmp.eq.s32.totalorder %s57, 0
    %s60 = sadd.s32 %s59, 1
    %s61 = scalar_select %p58, %s59, %s60
    %p64 = pneg %p58
    %p65 = scmp.eq.s32.totalorder %s11, 1
    %p66 = por %p64, %p65
    %p67 = scmp.ne.s32.totalorder %s59, %s62
    %p68 = scmp.eq.s32.totalorder %s11, 0
    %p69 = por %p67, %p68
    %p70 = scmp.ne.s32.totalorder %s59, %s62
    %p71 = scmp.eq.s32.totalorder %s16, 1
    %p72 = por %p70, %p71
    %p73 = scmp.ne.s32.totalorder %s62, %s63
    %p74 = scmp.eq.s32.totalorder %s16, 0
    %p75 = por %p73, %p74
    %p76 = scmp.ne.s32.totalorder %s62, %s63
    %p77 = scmp.eq.s32.totalorder %s17, 1
    %p78 = por %p76, %p77
    %p80 = scmp.ne.s32.totalorder %s63, %s79
    %p81 = scmp.eq.s32.totalorder %s17, 0
    %p82 = por %p80, %p81
    %s83 = ssub.s32 %s19, %s26
    %p84 = scmp.eq.s32.totalorder %s83, 0
    %s86 = sadd.s32 %s85, 1
    %s87 = scalar_select %p84, %s85, %s86
    %p90 = pneg %p84
    %p91 = scmp.eq.s32.totalorder %s11, 1
    %p92 = por %p90, %p91
    %p93 = scmp.ne.s32.totalorder %s85, %s88
    %p94 = scmp.eq.s32.totalorder %s11, 0
    %p95 = por %p93, %p94
    %p96 = scmp.ne.s32.totalorder %s85, %s88
    %p97 = scmp.eq.s32.totalorder %s16, 1
    %p98 = por %p96, %p97
    %p99 = scmp.ne.s32.totalorder %s88, %s89
    %p100 = scmp.eq.s32.totalorder %s16, 0
    %p101 = por %p99, %p100
    %p102 = scmp.ne.s32.totalorder %s88, %s89
    %p103 = scmp.eq.s32.totalorder %s17, 1
    %p104 = por %p102, %p103
    %p106 = scmp.ne.s32.totalorder %s89, %s105
    %p107 = scmp.eq.s32.totalorder %s17, 0
    %p108 = por %p106, %p107
    %s109 = ssub.s32 %s19, %s26
    %p110 = scmp.eq.s32.totalorder %s109, 0
    %s112 = sadd.s32 %s111, 1
    %s113 = scalar_select %p110, %s111, %s112
    %p116 = pneg %p110
    %p117 = scmp.eq.s32.totalorder %s11, 1
    %p118 = por %p116, %p117
    %p119 = scmp.ne.s32.totalorder %s111, %s114
    %p120 = scmp.eq.s32.totalorder %s11, 0
    %p121 = por %p119, %p120
    %p122 = scmp.ne.s32.totalorder %s111, %s114
    %p123 = scmp.eq.s32.totalorder %s16, 1
    %p124 = por %p122, %p123
    %p125 = scmp.ne.s32.totalorder %s114, %s115
    %p126 = scmp.eq.s32.totalorder %s16, 0
    %p127 = por %p125, %p126
    %p128 = scmp.ne.s32.totalorder %s114, %s115
    %p129 = scmp.eq.s32.totalorder %s17, 1
    %p130 = por %p128, %p129
    %p132 = scmp.ne.s32.totalorder %s115, %s131
    %p133 = scmp.eq.s32.totalorder %s17, 0
    %p134 = por %p132, %p133
    %s135 = ssub.s32 %s19, %s26
    %p136 = scmp.eq.s32.totalorder %s135, 0
    %s138 = sadd.s32 %s137, 1
    %s139 = scalar_select %p136, %s137, %s138
    %p142 = pneg %p136
    %p143 = scmp.eq.s32.totalorder %s11, 1
    %p144 = por %p142, %p143
    %p145 = scmp.ne.s32.totalorder %s137, %s140
    %p146 = scmp.eq.s32.totalorder %s11, 0
    %p147 = por %p145, %p146
    %p148 = scmp.ne.s32.totalorder %s137, %s140
    %p149 = scmp.eq.s32.totalorder %s16, 1
    %p150 = por %p148, %p149
    %p151 = scmp.ne.s32.totalorder %s140, %s141
    %p152 = scmp.eq.s32.totalorder %s16, 0
    %p153 = por %p151, %p152
    %p154 = scmp.ne.s32.totalorder %s140, %s141
    %p155 = scmp.eq.s32.totalorder %s17, 1
    %p156 = por %p154, %p155
    %p158 = scmp.ne.s32.totalorder %s141, %s157
    %p159 = scmp.eq.s32.totalorder %s17, 0
    %p160 = por %p158, %p159
    %s161 = ssub.s32 %s18, %s30
    %s162 = ssub.s32 %s19, %s26
    %s163 = sor.u32 %s161, %s162
    %p164 = scmp.eq.s32.totalorder %s163, 0
    %s166 = sadd.s32 %s165, 1
    %s167 = scalar_select %p164, %s165, %s166
    %p170 = pneg %p164
    %p171 = scmp.eq.s32.totalorder %s11, 1
    %p172 = por %p170, %p171
    %p173 = scmp.ne.s32.totalorder %s165, %s168
    %p174 = scmp.eq.s32.totalorder %s11, 0
    %p175 = por %p173, %p174
    %p176 = scmp.ne.s32.totalorder %s165, %s168
    %p177 = scmp.eq.s32.totalorder %s16, 1
    %p178 = por %p176, %p177
    %p179 = scmp.ne.s32.totalorder %s168, %s169
    %p180 = scmp.eq.s32.totalorder %s16, 0
    %p181 = por %p179, %p180
    %p182 = scmp.ne.s32.totalorder %s168, %s169
    %p183 = scmp.eq.s32.totalorder %s17, 1
    %p184 = por %p182, %p183
    %p186 = scmp.ne.s32.totalorder %s169, %s185
    %p187 = scmp.eq.s32.totalorder %s17, 0
    %p188 = por %p186, %p187
    %p189 = scmp.le.s32.totalorder 1, %s11
    %p190 = scmp.lt.s32.totalorder %s11, 3
    %p191 = pnand %p189, %p190
    %p192 = pneg %p191
    // Predicated region
    $region9: #{tpu_custom_call.1} parent=5 // pred_check
      _
    $region10: #{tpu_custom_call.1} parent=5 // pred_check_branch
      %194 = sbr.rel (%p191) target = $region12
    $region11: #{tpu_custom_call.1} parent=5 // pred_region
      %s195 = ssub.s32 %s11, 1
      // Predicated region
      $region13: #{tpu_custom_call.1} parent=11 // pred_check
        %p196 = pneg %p75
      $region14: #{tpu_custom_call.1} parent=11 // pred_check_branch
        %198 = sbr.rel (%p196) target = $region16
      $region15: #{tpu_custom_call.1} parent=11 // pred_region
        %p199 = scmp.lt.s32.totalorder %s21, 0
        %s200 = scalar_select %p199, %s21, 0
        %s201 = smul.addr %s200, 2
        %s202 = scalar_lea.vmem %s1, %s201
      $region16: #{tpu_custom_call.1} parent=11 // pred_fallthru
        _
      // Predicated region
      $region17: #{tpu_custom_call.1} parent=11 // pred_check
        %p203 = pneg %p101
      $region18: #{tpu_custom_call.1} parent=11 // pred_check_branch
        %205 = sbr.rel (%p203) target = $region20
      $region19: #{tpu_custom_call.1} parent=11 // pred_region
        %p206 = scmp.lt.s32.totalorder %s21, 0
        %s207 = scalar_select %p206, %s21, 0
        %s208 = scalar_lea.vmem %s2, %s207
      $region20: #{tpu_custom_call.1} parent=11 // pred_fallthru
        _
      // Predicated region
      $region21: #{tpu_custom_call.1} parent=11 // pred_check
        %p209 = pneg %p127
      $region22: #{tpu_custom_call.1} parent=11 // pred_check_branch
        %211 = sbr.rel (%p209) target = $region24
      $region23: #{tpu_custom_call.1} parent=11 // pred_region
        %p212 = scmp.lt.s32.totalorder %s21, 0
        %s213 = scalar_select %p212, %s21, 0
        %s214 = smul.addr %s213, 8
        %s215 = scalar_lea.vmem %s3, %s214
      $region24: #{tpu_custom_call.1} parent=11 // pred_fallthru
        _
      // Predicated region
      $region25: #{tpu_custom_call.1} parent=11 // pred_check
        %p216 = pneg %p153
      $region26: #{tpu_custom_call.1} parent=11 // pred_check_branch
        %218 = sbr.rel (%p216) target = $region28
      $region27: #{tpu_custom_call.1} parent=11 // pred_region
        %p219 = scmp.lt.s32.totalorder %s21, 0
        %s220 = scalar_select %p219, %s21, 0
        %s221 = scalar_lea.vmem %s4, %s220
      $region28: #{tpu_custom_call.1} parent=11 // pred_fallthru
        _
    $region12: #{tpu_custom_call.1} parent=5 // pred_fallthru
      _
    %p222 = scmp.lt.s32.totalorder %s11, 2
    // Predicated region
    $region29: #{tpu_custom_call.1} parent=5 // pred_check
      %p223 = pneg %p222
    $region30: #{tpu_custom_call.1} parent=5 // pred_check_branch
      %225 = sbr.rel (%p223) target = $region32
    $region31: #{tpu_custom_call.1} parent=5 // pred_region
      // Predicated region
      $region33: #{tpu_custom_call.1} parent=31 // pred_check
        %p226 = pneg %p43
      $region34: #{tpu_custom_call.1} parent=31 // pred_check_branch
        %228 = sbr.rel (%p226) target = $region36
      $region35: #{tpu_custom_call.1} parent=31 // pred_region
        %p229 = scmp.lt.s32.totalorder %s18, 1
        %s230 = scalar_select %p229, %s18, 1
        %s231 = smul.addr %s230, 32
        %s232 = smul.addr %s231, 8
        %s233 = scalar_lea.vmem %s0, %s232
      $region36: #{tpu_custom_call.1} parent=31 // pred_fallthru
        _
    $region32: #{tpu_custom_call.1} parent=5 // pred_fallthru
      _
    %p234 = scmp.le.s32.totalorder 1, %s11
    %p235 = scmp.lt.s32.totalorder %s11, 3
    %p236 = pnand %p234, %p235
    %p237 = pneg %p236
    // Predicated region
    $region37: #{tpu_custom_call.1} parent=5 // pred_check
      _
    $region38: #{tpu_custom_call.1} parent=5 // pred_check_branch
      %239 = sbr.rel (%p236) target = $region40
    $region39: #{tpu_custom_call.1} parent=5 // pred_region
      %s240 = ssub.s32 %s11, 1
      %p241 = scmp.lt.s32.totalorder %s20, 1
      %s242 = scalar_select %p241, %s20, 1
      %s243 = smul.addr %s242, 32
      %s244 = smul.addr %s243, 8
      %s245 = scalar_lea.vmem %s0, %s244
      %p246 = pneg %p49
      %p247 = pneg %p46
      %p248 = scmp.lt.s32.totalorder %s21, 0
      %s249 = scalar_select %p248, %s21, 0
      %s250 = smul.addr %s249, 2
      %s251 = scalar_lea.vmem %s1, %s250
      %p252 = pneg %p75
      %p253 = pneg %p72
      %p254 = scmp.lt.s32.totalorder %s21, 0
      %s255 = scalar_select %p254, %s21, 0
      %s256 = scalar_lea.vmem %s2, %s255
      %p257 = pneg %p101
      %p258 = pneg %p98
      %p259 = scmp.lt.s32.totalorder %s21, 0
      %s260 = scalar_select %p259, %s21, 0
      %s261 = smul.addr %s260, 8
      %s262 = scalar_lea.vmem %s3, %s261
      %p263 = pneg %p127
      %p264 = pneg %p124
      %p265 = scmp.lt.s32.totalorder %s21, 0
      %s266 = scalar_select %p265, %s21, 0
      %s267 = scalar_lea.vmem %s4, %s266
      %p268 = pneg %p153
      %p269 = pneg %p150
      %p270 = pneg %p181
      %p271 = pneg %p178
      %p272 = scmp.lt.s32.totalorder %s20, 1
      %s273 = scalar_select %p272, %s20, 1
      %p274 = scmp.lt.s32.totalorder %s21, 0
      %s275 = scalar_select %p274, %s21, 0
      %s276 = smul.addr %s273, 32
      %s277 = sadd.s32 %s275, %s276
      %s278 = smul.addr %s277, 4
      %s279 = scalar_lea.vmem %s5, %s278
      %p280 = scmp.lt.s32.totalorder %s20, 1
      %s281 = scalar_select %p280, %s20, 1
      %s282 = smul.addr %s281, 32
      %s283 = smul.addr %s282, 8
      %s284 = scalar_lea.vmem %s0, %s283
      %p285 = scmp.lt.s32.totalorder %s21, 0
      %s286 = scalar_select %p285, %s21, 0
      %s287 = smul.addr %s286, 2
      %s288 = scalar_lea.vmem %s1, %s287
      %p289 = scmp.lt.s32.totalorder %s21, 0
      %s290 = scalar_select %p289, %s21, 0
      %s291 = scalar_lea.vmem %s2, %s290
      %p292 = scmp.lt.s32.totalorder %s21, 0
      %s293 = scalar_select %p292, %s21, 0
      %s294 = smul.addr %s293, 8
      %s295 = scalar_lea.vmem %s3, %s294
      %p296 = scmp.lt.s32.totalorder %s21, 0
      %s297 = scalar_select %p296, %s21, 0
      %s298 = scalar_lea.vmem %s4, %s297
      %p299 = scmp.lt.s32.totalorder %s20, 1
      %s300 = scalar_select %p299, %s20, 1
      %p301 = scmp.lt.s32.totalorder %s21, 0
      %s302 = scalar_select %p301, %s21, 0
      %s303 = smul.addr %s300, 32
      %s304 = sadd.s32 %s302, %s303
      %s305 = smul.addr %s304, 4
      %s306 = scalar_lea.vmem %s5, %s305
      %v308 = vld [vmem:[%s284] sm:$0xff]
      %v309 = vld [vmem:[%s284 + $0x8] sm:$0xff]
      %v310 = vld [vmem:[%s284 + $0x10] sm:$0xff]
      %v311 = vld [vmem:[%s284 + $0x18] sm:$0xff]
      %v312 = vld [vmem:[%s284 + $0x20] sm:$0xff]
      %v313 = vld [vmem:[%s284 + $0x28] sm:$0xff]
      %v314 = vld [vmem:[%s284 + $0x30] sm:$0xff]
      %v315 = vld [vmem:[%s284 + $0x38] sm:$0xff]
      %v316 = vld [vmem:[%s284 + $0x40] sm:$0xff]
      %v317 = vld [vmem:[%s284 + $0x48] sm:$0xff]
      %v318 = vld [vmem:[%s284 + $0x50] sm:$0xff]
      %v319 = vld [vmem:[%s284 + $0x58] sm:$0xff]
      %v320 = vld [vmem:[%s284 + $0x60] sm:$0xff]
      %v321 = vld [vmem:[%s284 + $0x68] sm:$0xff]
      %v322 = vld [vmem:[%s284 + $0x70] sm:$0xff]
      %v323 = vld [vmem:[%s284 + $0x78] sm:$0xff]
      %v324 = vld [vmem:[%s284 + $0x80] sm:$0xff]
      %v325 = vld [vmem:[%s284 + $0x88] sm:$0xff]
      %v326 = vld [vmem:[%s284 + $0x90] sm:$0xff]
      %v327 = vld [vmem:[%s284 + $0x98] sm:$0xff]
      %v328 = vld [vmem:[%s284 + $0xa0] sm:$0xff]
      %v329 = vld [vmem:[%s284 + $0xa8] sm:$0xff]
      %v330 = vld [vmem:[%s284 + $0xb0] sm:$0xff]
      %v331 = vld [vmem:[%s284 + $0xb8] sm:$0xff]
      %v332 = vld [vmem:[%s284 + $0xc0] sm:$0xff]
      %v333 = vld [vmem:[%s284 + $0xc8] sm:$0xff]
      %v334 = vld [vmem:[%s284 + $0xd0] sm:$0xff]
      %v335 = vld [vmem:[%s284 + $0xd8] sm:$0xff]
      %v336 = vld [vmem:[%s284 + $0xe0] sm:$0xff]
      %v337 = vld [vmem:[%s284 + $0xe8] sm:$0xff]
      %v338 = vld [vmem:[%s284 + $0xf0] sm:$0xff]
      %v339 = vld [vmem:[%s284 + $0xf8] sm:$0xff]
      %v340 = vpack.c.bf16 %v309, %v308
      %v341 = vpack.c.bf16 %v311, %v310
      %v342 = vpack.c.bf16 %v313, %v312
      %v343 = vpack.c.bf16 %v315, %v314
      %v344 = vpack.c.bf16 %v317, %v316
      %v345 = vpack.c.bf16 %v319, %v318
      %v346 = vpack.c.bf16 %v321, %v320
      %v347 = vpack.c.bf16 %v323, %v322
      %v348 = vpack.c.bf16 %v325, %v324
      %v349 = vpack.c.bf16 %v327, %v326
      %v350 = vpack.c.bf16 %v329, %v328
      %v351 = vpack.c.bf16 %v331, %v330
      %v352 = vpack.c.bf16 %v333, %v332
      %v353 = vpack.c.bf16 %v335, %v334
      %v354 = vpack.c.bf16 %v337, %v336
      %v355 = vpack.c.bf16 %v339, %v338
      %v356 = vld [vmem:[%s288] sm:$0x3]
      %v357 = vld [vmem:[%s291] sm:$0x1]
      %v359 = vlaneseq
      %v360 = vshrl.u32 %v359, 7
      %v361 = vsub.s32 0, %v360
      %v362 = vrot.slane %v357, %v361
      %vm364 = vcmask 31744
      %v366 = vsel %vm364, %v340, 0
      %v369 = vsel %vm364, %v341, 0
      %v372 = vsel %vm364, %v342, 0
      %v375 = vsel %vm364, %v343, 0
      %v378 = vsel %vm364, %v344, 0
      %v381 = vsel %vm364, %v345, 0
      %v384 = vsel %vm364, %v346, 0
      %v387 = vsel %vm364, %v347, 0
      %v390 = vsel %vm364, %v348, 0
      %v393 = vsel %vm364, %v349, 0
      %v396 = vsel %vm364, %v350, 0
      %v399 = vsel %vm364, %v351, 0
      %v402 = vsel %vm364, %v352, 0
      %v405 = vsel %vm364, %v353, 0
      %v408 = vsel %vm364, %v354, 0
      %v411 = vsel %vm364, %v355, 0
      %vm413 = vcmask 1041408
      %v415 = vsel %vm413, %v356, 0
      %417 = vmatprep.subr.bf16.mxu0 0
      %418 = vmatpush1.bf16.msra.mxu0 %v415
      %419 = vmatprep.subr.bf16.mxu0 0
      %420 = vmatpush1.bf16.msra.mxu0 0
      %421 = vmatprep.subr.bf16.mxu0 0
      %422 = vmatpush1.bf16.msra.mxu0 0
      %423 = vmatprep.subr.bf16.mxu0 0
      %424 = vmatpush1.bf16.msra.mxu0 0
      %425 = vmatprep.subr.bf16.mxu0 0
      %426 = vmatpush1.bf16.msra.mxu0 0
      %427 = vmatprep.subr.bf16.mxu0 0
      %428 = vmatpush1.bf16.msra.mxu0 0
      %429 = vmatprep.subr.bf16.mxu0 0
      %430 = vmatpush1.bf16.msra.mxu0 0
      %431 = vmatprep.subr.bf16.mxu0 0
      %432 = vmatpush1.bf16.msra.mxu0 0
      %433 = vmatprep.subr.bf16.mxu0 0
      %434 = vmatpush1.bf16.msra.mxu0 0
      %435 = vmatprep.subr.bf16.mxu0 0
      %436 = vmatpush1.bf16.msra.mxu0 0
      %437 = vmatprep.subr.bf16.mxu0 0
      %438 = vmatpush1.bf16.msra.mxu0 0
      %439 = vmatprep.subr.bf16.mxu0 0
      %440 = vmatpush1.bf16.msra.mxu0 0
      %441 = vmatprep.subr.bf16.mxu0 0
      %442 = vmatpush1.bf16.msra.mxu0 0
      %443 = vmatprep.subr.bf16.mxu0 0
      %444 = vmatpush1.bf16.msra.mxu0 0
      %445 = vmatprep.subr.bf16.mxu0 0
      %446 = vmatpush1.bf16.msra.mxu0 0
      %447 = vmatprep.subr.bf16.mxu0 0
      %448 = vmatpush1.bf16.msra.mxu0 0
      %449 = vmatprep.mubr.bf16.mxu0 0
      %450 = vmatmul.mubr.bf16.gmra.mrb[0].mxu0 %v366
      %v451 = vpop.f32.mrb[0].mxu0
      %v452 = vadd.f32 %v362, %v451
      %v453 = vpop.f32.mrb[0].mxu0
      %v454 = vpop.f32.mrb[0].mxu0
      %v455 = vadd.f32 %v362, %v454
      %v456 = vpop.f32.mrb[0].mxu0
      %457 = vmatprep.mubr.bf16.mxu0 0
      %458 = vmatmul.mubr.bf16.gmra.mrb[0].mxu0 %v369
      %v459 = vpop.f32.mrb[0].mxu0
      %v460 = vadd.f32 %v362, %v459
      %v461 = vpop.f32.mrb[0].mxu0
      %v462 = vpop.f32.mrb[0].mxu0
      %v463 = vadd.f32 %v362, %v462
      %v464 = vpop.f32.mrb[0].mxu0
      %465 = vmatprep.mubr.bf16.mxu0 0
      %466 = vmatmul.mubr.bf16.gmra.mrb[0].mxu0 %v372
      %v467 = vpop.f32.mrb[0].mxu0
      %v468 = vadd.f32 %v362, %v467
      %v469 = vpop.f32.mrb[0].mxu0
      %v470 = vpop.f32.mrb[0].mxu0
      %v471 = vadd.f32 %v362, %v470
      %v472 = vpop.f32.mrb[0].mxu0
      %473 = vmatprep.mubr.bf16.mxu0 0
      %474 = vmatmul.mubr.bf16.gmra.mrb[0].mxu0 %v375
      %v475 = vpop.f32.mrb[0].mxu0
      %v476 = vadd.f32 %v362, %v475
      %v477 = vpop.f32.mrb[0].mxu0
      %v478 = vpop.f32.mrb[0].mxu0
      %v479 = vadd.f32 %v362, %v478
      %v480 = vpop.f32.mrb[0].mxu0
      %481 = vmatprep.mubr.bf16.mxu0 0
      %482 = vmatmul.mubr.bf16.gmra.mrb[0].mxu0 %v378
      %v483 = vpop.f32.mrb[0].mxu0
      %v484 = vadd.f32 %v362, %v483
      %v485 = vpop.f32.mrb[0].mxu0
      %v486 = vpop.f32.mrb[0].mxu0
      %v487 = vadd.f32 %v362, %v486
      %v488 = vpop.f32.mrb[0].mxu0
      %489 = vmatprep.mubr.bf16.mxu0 0
      %490 = vmatmul.mubr.bf16.gmra.mrb[0].mxu0 %v381
      %v491 = vpop.f32.mrb[0].mxu0
      %v492 = vadd.f32 %v362, %v491
      %v493 = vpop.f32.mrb[0].mxu0
      %v494 = vpop.f32.mrb[0].mxu0
      %v495 = vadd.f32 %v362, %v494
      %v496 = vpop.f32.mrb[0].mxu0
      %497 = vmatprep.mubr.bf16.mxu0 0
      %498 = vmatmul.mubr.bf16.gmra.mrb[0].mxu0 %v384
      %v499 = vpop.f32.mrb[0].mxu0
      %v500 = vadd.f32 %v362, %v499
      %v501 = vpop.f32.mrb[0].mxu0
      %v502 = vpop.f32.mrb[0].mxu0
      %v503 = vadd.f32 %v362, %v502
      %v504 = vpop.f32.mrb[0].mxu0
      %505 = vmatprep.mubr.bf16.mxu0 0
      %506 = vmatmul.mubr.bf16.gmra.mrb[0].mxu0 %v387
      %v507 = vpop.f32.mrb[0].mxu0
      %v508 = vadd.f32 %v362, %v507
      %v509 = vpop.f32.mrb[0].mxu0
      %v510 = vpop.f32.mrb[0].mxu0
      %v511 = vadd.f32 %v362, %v510
      %v512 = vpop.f32.mrb[0].mxu0
      %513 = vmatprep.mubr.bf16.mxu0 0
      %514 = vmatmul.mubr.bf16.gmra.mrb[0].mxu0 %v390
      %v515 = vpop.f32.mrb[0].mxu0
      %v516 = vadd.f32 %v362, %v515
      %v517 = vpop.f32.mrb[0].mxu0
      %v518 = vpop.f32.mrb[0].mxu0
      %v519 = vadd.f32 %v362, %v518
      %v520 = vpop.f32.mrb[0].mxu0
      %521 = vmatprep.mubr.bf16.mxu0 0
      %522 = vmatmul.mubr.bf16.gmra.mrb[0].mxu0 %v393
      %v523 = vpop.f32.mrb[0].mxu0
      %v524 = vadd.f32 %v362, %v523
      %v525 = vpop.f32.mrb[0].mxu0
      %v526 = vpop.f32.mrb[0].mxu0
      %v527 = vadd.f32 %v362, %v526
      %v528 = vpop.f32.mrb[0].mxu0
      %529 = vmatprep.mubr.bf16.mxu0 0
      %530 = vmatmul.mubr.bf16.gmra.mrb[0].mxu0 %v396
      %v531 = vpop.f32.mrb[0].mxu0
      %v532 = vadd.f32 %v362, %v531
      %v533 = vpop.f32.mrb[0].mxu0
      %v534 = vpop.f32.mrb[0].mxu0
      %v535 = vadd.f32 %v362, %v534
      %v536 = vpop.f32.mrb[0].mxu0
      %537 = vmatprep.mubr.bf16.mxu0 0
      %538 = vmatmul.mubr.bf16.gmra.mrb[0].mxu0 %v399
      %v539 = vpop.f32.mrb[0].mxu0
      %v540 = vadd.f32 %v362, %v539
      %v541 = vpop.f32.mrb[0].mxu0
      %v542 = vpop.f32.mrb[0].mxu0
      %v543 = vadd.f32 %v362, %v542
      %v544 = vpop.f32.mrb[0].mxu0
      %545 = vmatprep.mubr.bf16.mxu0 0
      %546 = vmatmul.mubr.bf16.gmra.mrb[0].mxu0 %v402
      %v547 = vpop.f32.mrb[0].mxu0
      %v548 = vadd.f32 %v362, %v547
      %v549 = vpop.f32.mrb[0].mxu0
      %v550 = vpop.f32.mrb[0].mxu0
      %v551 = vadd.f32 %v362, %v550
      %v552 = vpop.f32.mrb[0].mxu0
      %553 = vmatprep.mubr.bf16.mxu0 0
      %554 = vmatmul.mubr.bf16.gmra.mrb[0].mxu0 %v405
      %v555 = vpop.f32.mrb[0].mxu0
      %v556 = vadd.f32 %v362, %v555
      %v557 = vpop.f32.mrb[0].mxu0
      %v558 = vpop.f32.mrb[0].mxu0
      %v559 = vadd.f32 %v362, %v558
      %v560 = vpop.f32.mrb[0].mxu0
      %561 = vmatprep.mubr.bf16.mxu0 0
      %562 = vmatmul.mubr.bf16.gmra.mrb[0].mxu0 %v408
      %v563 = vpop.f32.mrb[0].mxu0
      %v564 = vadd.f32 %v362, %v563
      %v565 = vpop.f32.mrb[0].mxu0
      %v566 = vpop.f32.mrb[0].mxu0
      %v567 = vadd.f32 %v362, %v566
      %v568 = vpop.f32.mrb[0].mxu0
      %569 = vmatprep.mubr.bf16.mxu0 0
      %570 = vmatmul.mubr.bf16.gmra.mrb[0].mxu0 %v411
      %v571 = vpop.f32.mrb[0].mxu0
      %v572 = vadd.f32 %v362, %v571
      %v573 = vpop.f32.mrb[0].mxu0
      %v574 = vpop.f32.mrb[0].mxu0
      %v575 = vadd.f32 %v362, %v574
      %v576 = vpop.f32.mrb[0].mxu0
      %577 = vdwg.mxu0
      %v578 = vmax.f32 %v452, 0.0
      %v579 = vmax.f32 %v455, 0.0
      %v580 = vmax.f32 %v460, 0.0
      %v581 = vmax.f32 %v463, 0.0
      %v582 = vmax.f32 %v468, 0.0
      %v583 = vmax.f32 %v471, 0.0
      %v584 = vmax.f32 %v476, 0.0
      %v585 = vmax.f32 %v479, 0.0
      %v586 = vmax.f32 %v484, 0.0
      %v587 = vmax.f32 %v487, 0.0
      %v588 = vmax.f32 %v492, 0.0
      %v589 = vmax.f32 %v495, 0.0
      %v590 = vmax.f32 %v500, 0.0
      %v591 = vmax.f32 %v503, 0.0
      %v592 = vmax.f32 %v508, 0.0
      %v593 = vmax.f32 %v511, 0.0
      %v594 = vmax.f32 %v516, 0.0
      %v595 = vmax.f32 %v519, 0.0
      %v596 = vmax.f32 %v524, 0.0
      %v597 = vmax.f32 %v527, 0.0
      %v598 = vmax.f32 %v532, 0.0
      %v599 = vmax.f32 %v535, 0.0
      %v600 = vmax.f32 %v540, 0.0
      %v601 = vmax.f32 %v543, 0.0
      %v602 = vmax.f32 %v548, 0.0
      %v603 = vmax.f32 %v551, 0.0
      %v604 = vmax.f32 %v556, 0.0
      %v605 = vmax.f32 %v559, 0.0
      %v606 = vmax.f32 %v564, 0.0
      %v607 = vmax.f32 %v567, 0.0
      %v608 = vmax.f32 %v572, 0.0
      %v609 = vmax.f32 %v575, 0.0
      %v610 = vmin.f32 %v578, 6.0
      %v611 = vmin.f32 %v579, 6.0
      %v612 = vmin.f32 %v580, 6.0
      %v613 = vmin.f32 %v581, 6.0
      %v614 = vmin.f32 %v582, 6.0
      %v615 = vmin.f32 %v583, 6.0
      %v616 = vmin.f32 %v584, 6.0
      %v617 = vmin.f32 %v585, 6.0
      %v618 = vmin.f32 %v586, 6.0
      %v619 = vmin.f32 %v587, 6.0
      %v620 = vmin.f32 %v588, 6.0
      %v621 = vmin.f32 %v589, 6.0
      %v622 = vmin.f32 %v590, 6.0
      %v623 = vmin.f32 %v591, 6.0
      %v624 = vmin.f32 %v592, 6.0
      %v625 = vmin.f32 %v593, 6.0
      %v626 = vmin.f32 %v594, 6.0
      %v627 = vmin.f32 %v595, 6.0
      %v628 = vmin.f32 %v596, 6.0
      %v629 = vmin.f32 %v597, 6.0
      %v630 = vmin.f32 %v598, 6.0
      %v631 = vmin.f32 %v599, 6.0
      %v632 = vmin.f32 %v600, 6.0
      %v633 = vmin.f32 %v601, 6.0
      %v634 = vmin.f32 %v602, 6.0
      %v635 = vmin.f32 %v603, 6.0
      %v636 = vmin.f32 %v604, 6.0
      %v637 = vmin.f32 %v605, 6.0
      %v638 = vmin.f32 %v606, 6.0
      %v639 = vmin.f32 %v607, 6.0
      %v640 = vmin.f32 %v608, 6.0
      %v641 = vmin.f32 %v609, 6.0
      %vm642 = vcmask 64512
      %643 = vst.msk [vmem:[#allocation2] sm:$0xff] %vm642, 0.0
      %644 = vst.msk [vmem:[#allocation2 + $0x8] sm:$0xff] %vm642, 0.0
      %vm645 = vcmask 58368
      %646 = vst.msk [vmem:[#allocation2 + $0x10] sm:$0x3] %vm645, 0.0
      %647 = vst.msk [vmem:[#allocation2 + $0x18] sm:$0xff] %vm642, 0.0
      %648 = vst.msk [vmem:[#allocation2 + $0x20] sm:$0xff] %vm642, 0.0
      %649 = vst.msk [vmem:[#allocation2 + $0x28] sm:$0x3] %vm645, 0.0
      %650 = vst.msk [vmem:[#allocation2 + $0x30] sm:$0xff] %vm642, 0.0
      %651 = vst.msk [vmem:[#allocation2 + $0x38] sm:$0xff] %vm642, 0.0
      %652 = vst.msk [vmem:[#allocation2 + $0x40] sm:$0x3] %vm645, 0.0
      %653 = vst.msk [vmem:[#allocation2 + $0x48] sm:$0xff] %vm642, 0.0
      %654 = vst.msk [vmem:[#allocation2 + $0x50] sm:$0xff] %vm642, 0.0
      %655 = vst.msk [vmem:[#allocation2 + $0x58] sm:$0x3] %vm645, 0.0
      %656 = vst.msk [vmem:[#allocation2 + $0x60] sm:$0xff] %vm642, 0.0
      %657 = vst.msk [vmem:[#allocation2 + $0x68] sm:$0xff] %vm642, 0.0
      %658 = vst.msk [vmem:[#allocation2 + $0x70] sm:$0x3] %vm645, 0.0
      %659 = vst.msk [vmem:[#allocation2 + $0x78] sm:$0xff] %vm642, 0.0
      %660 = vst.msk [vmem:[#allocation2 + $0x80] sm:$0xff] %vm642, 0.0
      %661 = vst.msk [vmem:[#allocation2 + $0x88] sm:$0x3] %vm645, 0.0
      %662 = vst.msk [vmem:[#allocation2 + $0x90] sm:$0xff] %vm642, 0.0
      %663 = vst.msk [vmem:[#allocation2 + $0x98] sm:$0xff] %vm642, 0.0
      %664 = vst.msk [vmem:[#allocation2 + $0xa0] sm:$0x3] %vm645, 0.0
      %665 = vst.msk [vmem:[#allocation2 + $0xa8] sm:$0xff] %vm642, 0.0
      %666 = vst.msk [vmem:[#allocation2 + $0xb0] sm:$0xff] %vm642, 0.0
      %667 = vst.msk [vmem:[#allocation2 + $0xb8] sm:$0x3] %vm645, 0.0
      %668 = vst.msk [vmem:[#allocation2 + $0xc0] sm:$0xff] %vm642, 0.0
      %669 = vst.msk [vmem:[#allocation2 + $0xc8] sm:$0xff] %vm642, 0.0
      %670 = vst.msk [vmem:[#allocation2 + $0xd0] sm:$0x3] %vm645, 0.0
      %671 = vst.msk [vmem:[#allocation2 + $0xd8] sm:$0xff] %vm642, 0.0
      %672 = vst.msk [vmem:[#allocation2 + $0xe0] sm:$0xff] %vm642, 0.0
      %673 = vst.msk [vmem:[#allocation2 + $0xe8] sm:$0x3] %vm645, 0.0
      %674 = vst.msk [vmem:[#allocation2 + $0xf0] sm:$0xff] %vm642, 0.0
      %675 = vst.msk [vmem:[#allocation2 + $0xf8] sm:$0xff] %vm642, 0.0
      %676 = vst.msk [vmem:[#allocation2 + $0x100] sm:$0x3] %vm645, 0.0
      %677 = vst.msk [vmem:[#allocation2 + $0x108] sm:$0xff] %vm642, 0.0
      %678 = vst.msk [vmem:[#allocation2 + $0x110] sm:$0xff] %vm642, 0.0
      %679 = vst.msk [vmem:[#allocation2 + $0x118] sm:$0x3] %vm645, 0.0
      %680 = vst.msk [vmem:[#allocation2 + $0x120] sm:$0xff] %vm642, 0.0
      %681 = vst.msk [vmem:[#allocation2 + $0x128] sm:$0xff] %vm642, 0.0
      %682 = vst.msk [vmem:[#allocation2 + $0x130] sm:$0x3] %vm645, 0.0
      %683 = vst.msk [vmem:[#allocation2 + $0x138] sm:$0xff] %vm642, 0.0
      %684 = vst.msk [vmem:[#allocation2 + $0x140] sm:$0xff] %vm642, 0.0
      %685 = vst.msk [vmem:[#allocation2 + $0x148] sm:$0x3] %vm645, 0.0
      %686 = vst.msk [vmem:[#allocation2 + $0x150] sm:$0xff] %vm642, 0.0
      %687 = vst.msk [vmem:[#allocation2 + $0x158] sm:$0xff] %vm642, 0.0
      %688 = vst.msk [vmem:[#allocation2 + $0x160] sm:$0x3] %vm645, 0.0
      %689 = vst.msk [vmem:[#allocation2 + $0x168] sm:$0xff] %vm642, 0.0
      %690 = vst.msk [vmem:[#allocation2 + $0x170] sm:$0xff] %vm642, 0.0
      %691 = vst.msk [vmem:[#allocation2 + $0x178] sm:$0x3] %vm645, 0.0
      %692 = vst.msk [vmem:[#allocation2 + $0x180] sm:$0xff] %vm642, 0.0
      %693 = vst.msk [vmem:[#allocation2 + $0x188] sm:$0xff] %vm642, 0.0
      %694 = vst.msk [vmem:[#allocation2 + $0x190] sm:$0x3] %vm645, 0.0
      %695 = vst.msk [vmem:[#allocation2 + $0x198] sm:$0xff] %vm642, 0.0
      %696 = vst.msk [vmem:[#allocation2 + $0x1a0] sm:$0xff] %vm642, 0.0
      %697 = vst.msk [vmem:[#allocation2 + $0x1a8] sm:$0x3] %vm645, 0.0
      %s698 = scalar_lea.vmem [#allocation2], 24
      %699 = vst.msk [vmem:[%s698 + $0x1] sm:$0xff] %vm642, %v610
      %700 = vst.msk [vmem:[%s698 + $0x9] sm:$0xff] %vm642, %v611
      %701 = vst.msk [vmem:[%s698 + $0x19] sm:$0xff] %vm642, %v612
      %702 = vst.msk [vmem:[%s698 + $0x21] sm:$0xff] %vm642, %v613
      %703 = vst.msk [vmem:[%s698 + $0x31] sm:$0xff] %vm642, %v614
      %704 = vst.msk [vmem:[%s698 + $0x39] sm:$0xff] %vm642, %v615
      %705 = vst.msk [vmem:[%s698 + $0x49] sm:$0xff] %vm642, %v616
      %706 = vst.msk [vmem:[%s698 + $0x51] sm:$0xff] %vm642, %v617
      %707 = vst.msk [vmem:[%s698 + $0x61] sm:$0xff] %vm642, %v618
      %708 = vst.msk [vmem:[%s698 + $0x69] sm:$0xff] %vm642, %v619
      %709 = vst.msk [vmem:[%s698 + $0x79] sm:$0xff] %vm642, %v620
      %710 = vst.msk [vmem:[%s698 + $0x81] sm:$0xff] %vm642, %v621
      %711 = vst.msk [vmem:[%s698 + $0x91] sm:$0xff] %vm642, %v622
      %712 = vst.msk [vmem:[%s698 + $0x99] sm:$0xff] %vm642, %v623
      %713 = vst.msk [vmem:[%s698 + $0xa9] sm:$0xff] %vm642, %v624
      %714 = vst.msk [vmem:[%s698 + $0xb1] sm:$0xff] %vm642, %v625
      %715 = vst.msk [vmem:[%s698 + $0xc1] sm:$0xff] %vm642, %v626
      %716 = vst.msk [vmem:[%s698 + $0xc9] sm:$0xff] %vm642, %v627
      %717 = vst.msk [vmem:[%s698 + $0xd9] sm:$0xff] %vm642, %v628
      %718 = vst.msk [vmem:[%s698 + $0xe1] sm:$0xff] %vm642, %v629
      %719 = vst.msk [vmem:[%s698 + $0xf1] sm:$0xff] %vm642, %v630
      %720 = vst.msk [vmem:[%s698 + $0xf9] sm:$0xff] %vm642, %v631
      %721 = vst.msk [vmem:[%s698 + $0x109] sm:$0xff] %vm642, %v632
      %722 = vst.msk [vmem:[%s698 + $0x111] sm:$0xff] %vm642, %v633
      %723 = vst.msk [vmem:[%s698 + $0x121] sm:$0xff] %vm642, %v634
      %724 = vst.msk [vmem:[%s698 + $0x129] sm:$0xff] %vm642, %v635
      %725 = vst.msk [vmem:[%s698 + $0x139] sm:$0xff] %vm642, %v636
      %726 = vst.msk [vmem:[%s698 + $0x141] sm:$0xff] %vm642, %v637
      %727 = vst.msk [vmem:[%s698 + $0x151] sm:$0xff] %vm642, %v638
      %728 = vst.msk [vmem:[%s698 + $0x159] sm:$0xff] %vm642, %v639
      %729 = vst.msk [vmem:[%s698 + $0x169] sm:$0xff] %vm642, %v640
      %730 = vst.msk [vmem:[%s698 + $0x171] sm:$0xff] %vm642, %v641
      %v731 = vld [vmem:[%s298] sm:$0x1]
      %v733 = vlaneseq
      %v734 = vshrl.u32 %v733, 7
      %v735 = vsub.s32 0, %v734
      %v736 = vrot.slane %v731, %v735
      %v738 = vld [vmem:[%s295] sm:$0x1]
      %v739 = vld [vmem:[#allocation2] sm:$0xff]
      %v740 = vld [vmem:[#allocation2 + $0x8] sm:$0xff]
      %v741 = vld [vmem:[#allocation2 + $0x18] sm:$0xff]
      %v742 = vld [vmem:[#allocation2 + $0x20] sm:$0xff]
      %v743 = vld [vmem:[#allocation2 + $0x30] sm:$0xff]
      %v744 = vld [vmem:[#allocation2 + $0x38] sm:$0xff]
      %v745 = vld [vmem:[#allocation2 + $0x48] sm:$0xff]
      %v746 = vld [vmem:[#allocation2 + $0x50] sm:$0xff]
      %v747 = vld [vmem:[#allocation2 + $0x60] sm:$0xff]
      %v748 = vld [vmem:[#allocation2 + $0x68] sm:$0xff]
      %v749 = vld [vmem:[#allocation2 + $0x78] sm:$0xff]
      %v750 = vld [vmem:[#allocation2 + $0x80] sm:$0xff]
      %v751 = vld [vmem:[#allocation2 + $0x90] sm:$0xff]
      %v752 = vld [vmem:[#allocation2 + $0x98] sm:$0xff]
      %v753 = vld [vmem:[#allocation2 + $0xa8] sm:$0xff]
      %v754 = vld [vmem:[#allocation2 + $0xb0] sm:$0xff]
      %v755 = vld [vmem:[#allocation2 + $0xc0] sm:$0xff]
      %v756 = vld [vmem:[#allocation2 + $0xc8] sm:$0xff]
      %v757 = vld [vmem:[#allocation2 + $0xd8] sm:$0xff]
      %v758 = vld [vmem:[#allocation2 + $0xe0] sm:$0xff]
      %v759 = vld [vmem:[#allocation2 + $0xf0] sm:$0xff]
      %v760 = vld [vmem:[#allocation2 + $0xf8] sm:$0xff]
      %v761 = vld [vmem:[#allocation2 + $0x108] sm:$0xff]
      %v762 = vld [vmem:[#allocation2 + $0x110] sm:$0xff]
      %v763 = vld [vmem:[#allocation2 + $0x120] sm:$0xff]
      %v764 = vld [vmem:[#allocation2 + $0x128] sm:$0xff]
      %v765 = vld [vmem:[#allocation2 + $0x138] sm:$0xff]
      %v766 = vld [vmem:[#allocation2 + $0x140] sm:$0xff]
      %v767 = vld [vmem:[#allocation2 + $0x150] sm:$0xff]
      %v768 = vld [vmem:[#allocation2 + $0x158] sm:$0xff]
      %v769 = vld [vmem:[#allocation2 + $0x168] sm:$0xff]
      %v770 = vld [vmem:[#allocation2 + $0x170] sm:$0xff]
      %v771 = vlaneseq
      %v772 = vshrl.u32 %v771, 7
      %v773 = vsub.s32 0, %v772
      %v774 = vrot.slane %v738, %v773
      %v775 = vmul.f32 %v739, %v774
      %v776 = vmul.f32 %v740, %v774
      %v777 = vmul.f32 %v741, %v774
      %v778 = vmul.f32 %v742, %v774
      %v779 = vmul.f32 %v743, %v774
      %v780 = vmul.f32 %v744, %v774
      %v781 = vmul.f32 %v745, %v774
      %v782 = vmul.f32 %v746, %v774
      %v783 = vmul.f32 %v747, %v774
      %v784 = vmul.f32 %v748, %v774
      %v785 = vmul.f32 %v749, %v774
      %v786 = vmul.f32 %v750, %v774
      %v787 = vmul.f32 %v751, %v774
      %v788 = vmul.f32 %v752, %v774
      %v789 = vmul.f32 %v753, %v774
      %v790 = vmul.f32 %v754, %v774
      %v791 = vmul.f32 %v755, %v774
      %v792 = vmul.f32 %v756, %v774
      %v793 = vmul.f32 %v757, %v774
      %v794 = vmul.f32 %v758, %v774
      %v795 = vmul.f32 %v759, %v774
      %v796 = vmul.f32 %v760, %v774
      %v797 = vmul.f32 %v761, %v774
      %v798 = vmul.f32 %v762, %v774
      %v799 = vmul.f32 %v763, %v774
      %v800 = vmul.f32 %v764, %v774
      %v801 = vmul.f32 %v765, %v774
      %v802 = vmul.f32 %v766, %v774
      %v803 = vmul.f32 %v767, %v774
      %v804 = vmul.f32 %v768, %v774
      %v805 = vmul.f32 %v769, %v774
      %v806 = vmul.f32 %v770, %v774
      %v807 = vadd.f32 %v736, %v775
      %v808 = vadd.f32 %v736, %v776
      %v809 = vadd.f32 %v736, %v777
      %v810 = vadd.f32 %v736, %v778
      %v811 = vadd.f32 %v736, %v779
      %v812 = vadd.f32 %v736, %v780
      %v813 = vadd.f32 %v736, %v781
      %v814 = vadd.f32 %v736, %v782
      %v815 = vadd.f32 %v736, %v783
      %v816 = vadd.f32 %v736, %v784
      %v817 = vadd.f32 %v736, %v785
      %v818 = vadd.f32 %v736, %v786
      %v819 = vadd.f32 %v736, %v787
      %v820 = vadd.f32 %v736, %v788
      %v821 = vadd.f32 %v736, %v789
      %v822 = vadd.f32 %v736, %v790
      %v823 = vadd.f32 %v736, %v791
      %v824 = vadd.f32 %v736, %v792
      %v825 = vadd.f32 %v736, %v793
      %v826 = vadd.f32 %v736, %v794
      %v827 = vadd.f32 %v736, %v795
      %v828 = vadd.f32 %v736, %v796
      %v829 = vadd.f32 %v736, %v797
      %v830 = vadd.f32 %v736, %v798
      %v831 = vadd.f32 %v736, %v799
      %v832 = vadd.f32 %v736, %v800
      %v833 = vadd.f32 %v736, %v801
      %v834 = vadd.f32 %v736, %v802
      %v835 = vadd.f32 %v736, %v803
      %v836 = vadd.f32 %v736, %v804
      %v837 = vadd.f32 %v736, %v805
      %v838 = vadd.f32 %v736, %v806
      %v839 = vld [vmem:[%s295 + $0x1] sm:$0x1]
      %v840 = vld [vmem:[#allocation2 + $0x1] sm:$0xff]
      %v841 = vld [vmem:[#allocation2 + $0x9] sm:$0xff]
      %v842 = vld [vmem:[#allocation2 + $0x19] sm:$0xff]
      %v843 = vld [vmem:[#allocation2 + $0x21] sm:$0xff]
      %v844 = vld [vmem:[#allocation2 + $0x31] sm:$0xff]
      %v845 = vld [vmem:[#allocation2 + $0x39] sm:$0xff]
      %v846 = vld [vmem:[#allocation2 + $0x49] sm:$0xff]
      %v847 = vld [vmem:[#allocation2 + $0x51] sm:$0xff]
      %v848 = vld [vmem:[#allocation2 + $0x61] sm:$0xff]
      %v849 = vld [vmem:[#allocation2 + $0x69] sm:$0xff]
      %v850 = vld [vmem:[#allocation2 + $0x79] sm:$0xff]
      %v851 = vld [vmem:[#allocation2 + $0x81] sm:$0xff]
      %v852 = vld [vmem:[#allocation2 + $0x91] sm:$0xff]
      %v853 = vld [vmem:[#allocation2 + $0x99] sm:$0xff]
      %v854 = vld [vmem:[#allocation2 + $0xa9] sm:$0xff]
      %v855 = vld [vmem:[#allocation2 + $0xb1] sm:$0xff]
      %v856 = vld [vmem:[#allocation2 + $0xc1] sm:$0xff]
      %v857 = vld [vmem:[#allocation2 + $0xc9] sm:$0xff]
      %v858 = vld [vmem:[#allocation2 + $0xd9] sm:$0xff]
      %v859 = vld [vmem:[#allocation2 + $0xe1] sm:$0xff]
      %v860 = vld [vmem:[#allocation2 + $0xf1] sm:$0xff]
      %v861 = vld [vmem:[#allocation2 + $0xf9] sm:$0xff]
      %v862 = vld [vmem:[#allocation2 + $0x109] sm:$0xff]
      %v863 = vld [vmem:[#allocation2 + $0x111] sm:$0xff]
      %v864 = vld [vmem:[#allocation2 + $0x121] sm:$0xff]
      %v865 = vld [vmem:[#allocation2 + $0x129] sm:$0xff]
      %v866 = vld [vmem:[#allocation2 + $0x139] sm:$0xff]
      %v867 = vld [vmem:[#allocation2 + $0x141] sm:$0xff]
      %v868 = vld [vmem:[#allocation2 + $0x151] sm:$0xff]
      %v869 = vld [vmem:[#allocation2 + $0x159] sm:$0xff]
      %v870 = vld [vmem:[#allocation2 + $0x169] sm:$0xff]
      %v871 = vld [vmem:[#allocation2 + $0x171] sm:$0xff]
      %v872 = vlaneseq
      %v873 = vshrl.u32 %v872, 7
      %v874 = vsub.s32 0, %v873
      %v875 = vrot.slane %v839, %v874
      %v876 = vmul.f32 %v840, %v875
      %v877 = vmul.f32 %v841, %v875
      %v878 = vmul.f32 %v842, %v875
      %v879 = vmul.f32 %v843, %v875
      %v880 = vmul.f32 %v844, %v875
      %v881 = vmul.f32 %v845, %v875
      %v882 = vmul.f32 %v846, %v875
      %v883 = vmul.f32 %v847, %v875
      %v884 = vmul.f32 %v848, %v875
      %v885 = vmul.f32 %v849, %v875
      %v886 = vmul.f32 %v850, %v875
      %v887 = vmul.f32 %v851, %v875
      %v888 = vmul.f32 %v852, %v875
      %v889 = vmul.f32 %v853, %v875
      %v890 = vmul.f32 %v854, %v875
      %v891 = vmul.f32 %v855, %v875
      %v892 = vmul.f32 %v856, %v875
      %v893 = vmul.f32 %v857, %v875
      %v894 = vmul.f32 %v858, %v875
      %v895 = vmul.f32 %v859, %v875
      %v896 = vmul.f32 %v860, %v875
      %v897 = vmul.f32 %v861, %v875
      %v898 = vmul.f32 %v862, %v875
      %v899 = vmul.f32 %v863, %v875
      %v900 = vmul.f32 %v864, %v875
      %v901 = vmul.f32 %v865, %v875
      %v902 = vmul.f32 %v866, %v875
      %v903 = vmul.f32 %v867, %v875
      %v904 = vmul.f32 %v868, %v875
      %v905 = vmul.f32 %v869, %v875
      %v906 = vmul.f32 %v870, %v875
      %v907 = vmul.f32 %v871, %v875
      %v908 = vadd.f32 %v807, %v876
      %v909 = vadd.f32 %v808, %v877
      %v910 = vadd.f32 %v809, %v878
      %v911 = vadd.f32 %v810, %v879
      %v912 = vadd.f32 %v811, %v880
      %v913 = vadd.f32 %v812, %v881
      %v914 = vadd.f32 %v813, %v882
      %v915 = vadd.f32 %v814, %v883
      %v916 = vadd.f32 %v815, %v884
      %v917 = vadd.f32 %v816, %v885
      %v918 = vadd.f32 %v817, %v886
      %v919 = vadd.f32 %v818, %v887
      %v920 = vadd.f32 %v819, %v888
      %v921 = vadd.f32 %v820, %v889
      %v922 = vadd.f32 %v821, %v890
      %v923 = vadd.f32 %v822, %v891
      %v924 = vadd.f32 %v823, %v892
      %v925 = vadd.f32 %v824, %v893
      %v926 = vadd.f32 %v825, %v894
      %v927 = vadd.f32 %v826, %v895
      %v928 = vadd.f32 %v827, %v896
      %v929 = vadd.f32 %v828, %v897
      %v930 = vadd.f32 %v829, %v898
      %v931 = vadd.f32 %v830, %v899
      %v932 = vadd.f32 %v831, %v900
      %v933 = vadd.f32 %v832, %v901
      %v934 = vadd.f32 %v833, %v902
      %v935 = vadd.f32 %v834, %v903
      %v936 = vadd.f32 %v835, %v904
      %v937 = vadd.f32 %v836, %v905
      %v938 = vadd.f32 %v837, %v906
      %v939 = vadd.f32 %v838, %v907
      %v940 = vld [vmem:[%s295 + $0x2] sm:$0x1]
      %v941 = vld [vmem:[#allocation2 + $0x2] sm:$0xff]
      %v942 = vld [vmem:[#allocation2 + $0xa] sm:$0xff]
      %v943 = vld [vmem:[#allocation2 + $0x1a] sm:$0xff]
      %v944 = vld [vmem:[#allocation2 + $0x22] sm:$0xff]
      %v945 = vld [vmem:[#allocation2 + $0x32] sm:$0xff]
      %v946 = vld [vmem:[#allocation2 + $0x3a] sm:$0xff]
      %v947 = vld [vmem:[#allocation2 + $0x4a] sm:$0xff]
      %v948 = vld [vmem:[#allocation2 + $0x52] sm:$0xff]
      %v949 = vld [vmem:[#allocation2 + $0x62] sm:$0xff]
      %v950 = vld [vmem:[#allocation2 + $0x6a] sm:$0xff]
      %v951 = vld [vmem:[#allocation2 + $0x7a] sm:$0xff]
      %v952 = vld [vmem:[#allocation2 + $0x82] sm:$0xff]
      %v953 = vld [vmem:[#allocation2 + $0x92] sm:$0xff]
      %v954 = vld [vmem:[#allocation2 + $0x9a] sm:$0xff]
      %v955 = vld [vmem:[#allocation2 + $0xaa] sm:$0xff]
      %v956 = vld [vmem:[#allocation2 + $0xb2] sm:$0xff]
      %v957 = vld [vmem:[#allocation2 + $0xc2] sm:$0xff]
      %v958 = vld [vmem:[#allocation2 + $0xca] sm:$0xff]
      %v959 = vld [vmem:[#allocation2 + $0xda] sm:$0xff]
      %v960 = vld [vmem:[#allocation2 + $0xe2] sm:$0xff]
      %v961 = vld [vmem:[#allocation2 + $0xf2] sm:$0xff]
      %v962 = vld [vmem:[#allocation2 + $0xfa] sm:$0xff]
      %v963 = vld [vmem:[#allocation2 + $0x10a] sm:$0xff]
      %v964 = vld [vmem:[#allocation2 + $0x112] sm:$0xff]
      %v965 = vld [vmem:[#allocation2 + $0x122] sm:$0xff]
      %v966 = vld [vmem:[#allocation2 + $0x12a] sm:$0xff]
      %v967 = vld [vmem:[#allocation2 + $0x13a] sm:$0xff]
      %v968 = vld [vmem:[#allocation2 + $0x142] sm:$0xff]
      %v969 = vld [vmem:[#allocation2 + $0x152] sm:$0xff]
      %v970 = vld [vmem:[#allocation2 + $0x15a] sm:$0xff]
      %v971 = vld [vmem:[#allocation2 + $0x16a] sm:$0xff]
      %v972 = vld [vmem:[#allocation2 + $0x172] sm:$0xff]
      %v973 = vlaneseq
      %v974 = vshrl.u32 %v973, 7
      %v975 = vsub.s32 0, %v974
      %v976 = vrot.slane %v940, %v975
      %v977 = vmul.f32 %v941, %v976
      %v978 = vmul.f32 %v942, %v976
      %v979 = vmul.f32 %v943, %v976
      %v980 = vmul.f32 %v944, %v976
      %v981 = vmul.f32 %v945, %v976
      %v982 = vmul.f32 %v946, %v976
      %v983 = vmul.f32 %v947, %v976
      %v984 = vmul.f32 %v948, %v976
      %v985 = vmul.f32 %v949, %v976
      %v986 = vmul.f32 %v950, %v976
      %v987 = vmul.f32 %v951, %v976
      %v988 = vmul.f32 %v952, %v976
      %v989 = vmul.f32 %v953, %v976
      %v990 = vmul.f32 %v954, %v976
      %v991 = vmul.f32 %v955, %v976
      %v992 = vmul.f32 %v956, %v976
      %v993 = vmul.f32 %v957, %v976
      %v994 = vmul.f32 %v958, %v976
      %v995 = vmul.f32 %v959, %v976
      %v996 = vmul.f32 %v960, %v976
      %v997 = vmul.f32 %v961, %v976
      %v998 = vmul.f32 %v962, %v976
      %v999 = vmul.f32 %v963, %v976
      %v1000 = vmul.f32 %v964, %v976
      %v1001 = vmul.f32 %v965, %v976
      %v1002 = vmul.f32 %v966, %v976
      %v1003 = vmul.f32 %v967, %v976
      %v1004 = vmul.f32 %v968, %v976
      %v1005 = vmul.f32 %v969, %v976
      %v1006 = vmul.f32 %v970, %v976
      %v1007 = vmul.f32 %v971, %v976
      %v1008 = vmul.f32 %v972, %v976
      %v1009 = vadd.f32 %v908, %v977
      %v1010 = vadd.f32 %v909, %v978
      %v1011 = vadd.f32 %v910, %v979
      %v1012 = vadd.f32 %v911, %v980
      %v1013 = vadd.f32 %v912, %v981
      %v1014 = vadd.f32 %v913, %v982
      %v1015 = vadd.f32 %v914, %v983
      %v1016 = vadd.f32 %v915, %v984
      %v1017 = vadd.f32 %v916, %v985
      %v1018 = vadd.f32 %v917, %v986
      %v1019 = vadd.f32 %v918, %v987
      %v1020 = vadd.f32 %v919, %v988
      %v1021 = vadd.f32 %v920, %v989
      %v1022 = vadd.f32 %v921, %v990
      %v1023 = vadd.f32 %v922, %v991
      %v1024 = vadd.f32 %v923, %v992
      %v1025 = vadd.f32 %v924, %v993
      %v1026 = vadd.f32 %v925, %v994
      %v1027 = vadd.f32 %v926, %v995
      %v1028 = vadd.f32 %v927, %v996
      %v1029 = vadd.f32 %v928, %v997
      %v1030 = vadd.f32 %v929, %v998
      %v1031 = vadd.f32 %v930, %v999
      %v1032 = vadd.f32 %v931, %v1000
      %v1033 = vadd.f32 %v932, %v1001
      %v1034 = vadd.f32 %v933, %v1002
      %v1035 = vadd.f32 %v934, %v1003
      %v1036 = vadd.f32 %v935, %v1004
      %v1037 = vadd.f32 %v936, %v1005
      %v1038 = vadd.f32 %v937, %v1006
      %v1039 = vadd.f32 %v938, %v1007
      %v1040 = vadd.f32 %v939, %v1008
      %v1041 = vld [vmem:[%s295 + $0x3] sm:$0x1]
      %v1042 = vld [vmem:[%s698] sm:$0xff]
      %v1043 = vld [vmem:[%s698 + $0x8] sm:$0xff]
      %v1044 = vld [vmem:[%s698 + $0x18] sm:$0xff]
      %v1045 = vld [vmem:[%s698 + $0x20] sm:$0xff]
      %v1046 = vld [vmem:[%s698 + $0x30] sm:$0xff]
      %v1047 = vld [vmem:[%s698 + $0x38] sm:$0xff]
      %v1048 = vld [vmem:[%s698 + $0x48] sm:$0xff]
      %v1049 = vld [vmem:[%s698 + $0x50] sm:$0xff]
      %v1050 = vld [vmem:[%s698 + $0x60] sm:$0xff]
      %v1051 = vld [vmem:[%s698 + $0x68] sm:$0xff]
      %v1052 = vld [vmem:[%s698 + $0x78] sm:$0xff]
      %v1053 = vld [vmem:[%s698 + $0x80] sm:$0xff]
      %v1054 = vld [vmem:[%s698 + $0x90] sm:$0xff]
      %v1055 = vld [vmem:[%s698 + $0x98] sm:$0xff]
      %v1056 = vld [vmem:[%s698 + $0xa8] sm:$0xff]
      %v1057 = vld [vmem:[%s698 + $0xb0] sm:$0xff]
      %v1058 = vld [vmem:[%s698 + $0xc0] sm:$0xff]
      %v1059 = vld [vmem:[%s698 + $0xc8] sm:$0xff]
      %v1060 = vld [vmem:[%s698 + $0xd8] sm:$0xff]
      %v1061 = vld [vmem:[%s698 + $0xe0] sm:$0xff]
      %v1062 = vld [vmem:[%s698 + $0xf0] sm:$0xff]
      %v1063 = vld [vmem:[%s698 + $0xf8] sm:$0xff]
      %v1064 = vld [vmem:[%s698 + $0x108] sm:$0xff]
      %v1065 = vld [vmem:[%s698 + $0x110] sm:$0xff]
      %v1066 = vld [vmem:[%s698 + $0x120] sm:$0xff]
      %v1067 = vld [vmem:[%s698 + $0x128] sm:$0xff]
      %v1068 = vld [vmem:[%s698 + $0x138] sm:$0xff]
      %v1069 = vld [vmem:[%s698 + $0x140] sm:$0xff]
      %v1070 = vld [vmem:[%s698 + $0x150] sm:$0xff]
      %v1071 = vld [vmem:[%s698 + $0x158] sm:$0xff]
      %v1072 = vld [vmem:[%s698 + $0x168] sm:$0xff]
      %v1073 = vld [vmem:[%s698 + $0x170] sm:$0xff]
      %v1074 = vlaneseq
      %v1075 = vshrl.u32 %v1074, 7
      %v1076 = vsub.s32 0, %v1075
      %v1077 = vrot.slane %v1041, %v1076
      %v1078 = vmul.f32 %v1042, %v1077
      %v1079 = vmul.f32 %v1043, %v1077
      %v1080 = vmul.f32 %v1044, %v1077
      %v1081 = vmul.f32 %v1045, %v1077
      %v1082 = vmul.f32 %v1046, %v1077
      %v1083 = vmul.f32 %v1047, %v1077
      %v1084 = vmul.f32 %v1048, %v1077
      %v1085 = vmul.f32 %v1049, %v1077
      %v1086 = vmul.f32 %v1050, %v1077
      %v1087 = vmul.f32 %v1051, %v1077
      %v1088 = vmul.f32 %v1052, %v1077
      %v1089 = vmul.f32 %v1053, %v1077
      %v1090 = vmul.f32 %v1054, %v1077
      %v1091 = vmul.f32 %v1055, %v1077
      %v1092 = vmul.f32 %v1056, %v1077
      %v1093 = vmul.f32 %v1057, %v1077
      %v1094 = vmul.f32 %v1058, %v1077
      %v1095 = vmul.f32 %v1059, %v1077
      %v1096 = vmul.f32 %v1060, %v1077
      %v1097 = vmul.f32 %v1061, %v1077
      %v1098 = vmul.f32 %v1062, %v1077
      %v1099 = vmul.f32 %v1063, %v1077
      %v1100 = vmul.f32 %v1064, %v1077
      %v1101 = vmul.f32 %v1065, %v1077
      %v1102 = vmul.f32 %v1066, %v1077
      %v1103 = vmul.f32 %v1067, %v1077
      %v1104 = vmul.f32 %v1068, %v1077
      %v1105 = vmul.f32 %v1069, %v1077
      %v1106 = vmul.f32 %v1070, %v1077
      %v1107 = vmul.f32 %v1071, %v1077
      %v1108 = vmul.f32 %v1072, %v1077
      %v1109 = vmul.f32 %v1073, %v1077
      %v1110 = vadd.f32 %v1009, %v1078
      %v1111 = vadd.f32 %v1010, %v1079
      %v1112 = vadd.f32 %v1011, %v1080
      %v1113 = vadd.f32 %v1012, %v1081
      %v1114 = vadd.f32 %v1013, %v1082
      %v1115 = vadd.f32 %v1014, %v1083
      %v1116 = vadd.f32 %v1015, %v1084
      %v1117 = vadd.f32 %v1016, %v1085
      %v1118 = vadd.f32 %v1017, %v1086
      %v1119 = vadd.f32 %v1018, %v1087
      %v1120 = vadd.f32 %v1019, %v1088
      %v1121 = vadd.f32 %v1020, %v1089
      %v1122 = vadd.f32 %v1021, %v1090
      %v1123 = vadd.f32 %v1022, %v1091
      %v1124 = vadd.f32 %v1023, %v1092
      %v1125 = vadd.f32 %v1024, %v1093
      %v1126 = vadd.f32 %v1025, %v1094
      %v1127 = vadd.f32 %v1026, %v1095
      %v1128 = vadd.f32 %v1027, %v1096
      %v1129 = vadd.f32 %v1028, %v1097
      %v1130 = vadd.f32 %v1029, %v1098
      %v1131 = vadd.f32 %v1030, %v1099
      %v1132 = vadd.f32 %v1031, %v1100
      %v1133 = vadd.f32 %v1032, %v1101
      %v1134 = vadd.f32 %v1033, %v1102
      %v1135 = vadd.f32 %v1034, %v1103
      %v1136 = vadd.f32 %v1035, %v1104
      %v1137 = vadd.f32 %v1036, %v1105
      %v1138 = vadd.f32 %v1037, %v1106
      %v1139 = vadd.f32 %v1038, %v1107
      %v1140 = vadd.f32 %v1039, %v1108
      %v1141 = vadd.f32 %v1040, %v1109
      %v1142 = vld [vmem:[%s295 + $0x4] sm:$0x1]
      %v1143 = vld [vmem:[%s698 + $0x1] sm:$0xff]
      %v1144 = vld [vmem:[%s698 + $0x9] sm:$0xff]
      %v1145 = vld [vmem:[%s698 + $0x19] sm:$0xff]
      %v1146 = vld [vmem:[%s698 + $0x21] sm:$0xff]
      %v1147 = vld [vmem:[%s698 + $0x31] sm:$0xff]
      %v1148 = vld [vmem:[%s698 + $0x39] sm:$0xff]
      %v1149 = vld [vmem:[%s698 + $0x49] sm:$0xff]
      %v1150 = vld [vmem:[%s698 + $0x51] sm:$0xff]
      %v1151 = vld [vmem:[%s698 + $0x61] sm:$0xff]
      %v1152 = vld [vmem:[%s698 + $0x69] sm:$0xff]
      %v1153 = vld [vmem:[%s698 + $0x79] sm:$0xff]
      %v1154 = vld [vmem:[%s698 + $0x81] sm:$0xff]
      %v1155 = vld [vmem:[%s698 + $0x91] sm:$0xff]
      %v1156 = vld [vmem:[%s698 + $0x99] sm:$0xff]
      %v1157 = vld [vmem:[%s698 + $0xa9] sm:$0xff]
      %v1158 = vld [vmem:[%s698 + $0xb1] sm:$0xff]
      %v1159 = vld [vmem:[%s698 + $0xc1] sm:$0xff]
      %v1160 = vld [vmem:[%s698 + $0xc9] sm:$0xff]
      %v1161 = vld [vmem:[%s698 + $0xd9] sm:$0xff]
      %v1162 = vld [vmem:[%s698 + $0xe1] sm:$0xff]
      %v1163 = vld [vmem:[%s698 + $0xf1] sm:$0xff]
      %v1164 = vld [vmem:[%s698 + $0xf9] sm:$0xff]
      %v1165 = vld [vmem:[%s698 + $0x109] sm:$0xff]
      %v1166 = vld [vmem:[%s698 + $0x111] sm:$0xff]
      %v1167 = vld [vmem:[%s698 + $0x121] sm:$0xff]
      %v1168 = vld [vmem:[%s698 + $0x129] sm:$0xff]
      %v1169 = vld [vmem:[%s698 + $0x139] sm:$0xff]
      %v1170 = vld [vmem:[%s698 + $0x141] sm:$0xff]
      %v1171 = vld [vmem:[%s698 + $0x151] sm:$0xff]
      %v1172 = vld [vmem:[%s698 + $0x159] sm:$0xff]
      %v1173 = vld [vmem:[%s698 + $0x169] sm:$0xff]
      %v1174 = vld [vmem:[%s698 + $0x171] sm:$0xff]
      %v1175 = vlaneseq
      %v1176 = vshrl.u32 %v1175, 7
      %v1177 = vsub.s32 0, %v1176
      %v1178 = vrot.slane %v1142, %v1177
      %v1179 = vmul.f32 %v1143, %v1178
      %v1180 = vmul.f32 %v1144, %v1178
      %v1181 = vmul.f32 %v1145, %v1178
      %v1182 = vmul.f32 %v1146, %v1178
      %v1183 = vmul.f32 %v1147, %v1178
      %v1184 = vmul.f32 %v1148, %v1178
      %v1185 = vmul.f32 %v1149, %v1178
      %v1186 = vmul.f32 %v1150, %v1178
      %v1187 = vmul.f32 %v1151, %v1178
      %v1188 = vmul.f32 %v1152, %v1178
      %v1189 = vmul.f32 %v1153, %v1178
      %v1190 = vmul.f32 %v1154, %v1178
      %v1191 = vmul.f32 %v1155, %v1178
      %v1192 = vmul.f32 %v1156, %v1178
      %v1193 = vmul.f32 %v1157, %v1178
      %v1194 = vmul.f32 %v1158, %v1178
      %v1195 = vmul.f32 %v1159, %v1178
      %v1196 = vmul.f32 %v1160, %v1178
      %v1197 = vmul.f32 %v1161, %v1178
      %v1198 = vmul.f32 %v1162, %v1178
      %v1199 = vmul.f32 %v1163, %v1178
      %v1200 = vmul.f32 %v1164, %v1178
      %v1201 = vmul.f32 %v1165, %v1178
      %v1202 = vmul.f32 %v1166, %v1178
      %v1203 = vmul.f32 %v1167, %v1178
      %v1204 = vmul.f32 %v1168, %v1178
      %v1205 = vmul.f32 %v1169, %v1178
      %v1206 = vmul.f32 %v1170, %v1178
      %v1207 = vmul.f32 %v1171, %v1178
      %v1208 = vmul.f32 %v1172, %v1178
      %v1209 = vmul.f32 %v1173, %v1178
      %v1210 = vmul.f32 %v1174, %v1178
      %v1211 = vadd.f32 %v1110, %v1179
      %v1212 = vadd.f32 %v1111, %v1180
      %v1213 = vadd.f32 %v1112, %v1181
      %v1214 = vadd.f32 %v1113, %v1182
      %v1215 = vadd.f32 %v1114, %v1183
      %v1216 = vadd.f32 %v1115, %v1184
      %v1217 = vadd.f32 %v1116, %v1185
      %v1218 = vadd.f32 %v1117, %v1186
      %v1219 = vadd.f32 %v1118, %v1187
      %v1220 = vadd.f32 %v1119, %v1188
      %v1221 = vadd.f32 %v1120, %v1189
      %v1222 = vadd.f32 %v1121, %v1190
      %v1223 = vadd.f32 %v1122, %v1191
      %v1224 = vadd.f32 %v1123, %v1192
      %v1225 = vadd.f32 %v1124, %v1193
      %v1226 = vadd.f32 %v1125, %v1194
      %v1227 = vadd.f32 %v1126, %v1195
      %v1228 = vadd.f32 %v1127, %v1196
      %v1229 = vadd.f32 %v1128, %v1197
      %v1230 = vadd.f32 %v1129, %v1198
      %v1231 = vadd.f32 %v1130, %v1199
      %v1232 = vadd.f32 %v1131, %v1200
      %v1233 = vadd.f32 %v1132, %v1201
      %v1234 = vadd.f32 %v1133, %v1202
      %v1235 = vadd.f32 %v1134, %v1203
      %v1236 = vadd.f32 %v1135, %v1204
      %v1237 = vadd.f32 %v1136, %v1205
      %v1238 = vadd.f32 %v1137, %v1206
      %v1239 = vadd.f32 %v1138, %v1207
      %v1240 = vadd.f32 %v1139, %v1208
      %v1241 = vadd.f32 %v1140, %v1209
      %v1242 = vadd.f32 %v1141, %v1210
      %v1243 = vld [vmem:[%s295 + $0x5] sm:$0x1]
      %v1244 = vld [vmem:[%s698 + $0x2] sm:$0xff]
      %v1245 = vld [vmem:[%s698 + $0xa] sm:$0xff]
      %v1246 = vld [vmem:[%s698 + $0x1a] sm:$0xff]
      %v1247 = vld [vmem:[%s698 + $0x22] sm:$0xff]
      %v1248 = vld [vmem:[%s698 + $0x32] sm:$0xff]
      %v1249 = vld [vmem:[%s698 + $0x3a] sm:$0xff]
      %v1250 = vld [vmem:[%s698 + $0x4a] sm:$0xff]
      %v1251 = vld [vmem:[%s698 + $0x52] sm:$0xff]
      %v1252 = vld [vmem:[%s698 + $0x62] sm:$0xff]
      %v1253 = vld [vmem:[%s698 + $0x6a] sm:$0xff]
      %v1254 = vld [vmem:[%s698 + $0x7a] sm:$0xff]
      %v1255 = vld [vmem:[%s698 + $0x82] sm:$0xff]
      %v1256 = vld [vmem:[%s698 + $0x92] sm:$0xff]
      %v1257 = vld [vmem:[%s698 + $0x9a] sm:$0xff]
      %v1258 = vld [vmem:[%s698 + $0xaa] sm:$0xff]
      %v1259 = vld [vmem:[%s698 + $0xb2] sm:$0xff]
      %v1260 = vld [vmem:[%s698 + $0xc2] sm:$0xff]
      %v1261 = vld [vmem:[%s698 + $0xca] sm:$0xff]
      %v1262 = vld [vmem:[%s698 + $0xda] sm:$0xff]
      %v1263 = vld [vmem:[%s698 + $0xe2] sm:$0xff]
      %v1264 = vld [vmem:[%s698 + $0xf2] sm:$0xff]
      %v1265 = vld [vmem:[%s698 + $0xfa] sm:$0xff]
      %v1266 = vld [vmem:[%s698 + $0x10a] sm:$0xff]
      %v1267 = vld [vmem:[%s698 + $0x112] sm:$0xff]
      %v1268 = vld [vmem:[%s698 + $0x122] sm:$0xff]
      %v1269 = vld [vmem:[%s698 + $0x12a] sm:$0xff]
      %v1270 = vld [vmem:[%s698 + $0x13a] sm:$0xff]
      %v1271 = vld [vmem:[%s698 + $0x142] sm:$0xff]
      %v1272 = vld [vmem:[%s698 + $0x152] sm:$0xff]
      %v1273 = vld [vmem:[%s698 + $0x15a] sm:$0xff]
      %v1274 = vld [vmem:[%s698 + $0x16a] sm:$0xff]
      %v1275 = vld [vmem:[%s698 + $0x172] sm:$0xff]
      %v1276 = vlaneseq
      %v1277 = vshrl.u32 %v1276, 7
      %v1278 = vsub.s32 0, %v1277
      %v1279 = vrot.slane %v1243, %v1278
      %v1280 = vmul.f32 %v1244, %v1279
      %v1281 = vmul.f32 %v1245, %v1279
      %v1282 = vmul.f32 %v1246, %v1279
      %v1283 = vmul.f32 %v1247, %v1279
      %v1284 = vmul.f32 %v1248, %v1279
      %v1285 = vmul.f32 %v1249, %v1279
      %v1286 = vmul.f32 %v1250, %v1279
      %v1287 = vmul.f32 %v1251, %v1279
      %v1288 = vmul.f32 %v1252, %v1279
      %v1289 = vmul.f32 %v1253, %v1279
      %v1290 = vmul.f32 %v1254, %v1279
      %v1291 = vmul.f32 %v1255, %v1279
      %v1292 = vmul.f32 %v1256, %v1279
      %v1293 = vmul.f32 %v1257, %v1279
      %v1294 = vmul.f32 %v1258, %v1279
      %v1295 = vmul.f32 %v1259, %v1279
      %v1296 = vmul.f32 %v1260, %v1279
      %v1297 = vmul.f32 %v1261, %v1279
      %v1298 = vmul.f32 %v1262, %v1279
      %v1299 = vmul.f32 %v1263, %v1279
      %v1300 = vmul.f32 %v1264, %v1279
      %v1301 = vmul.f32 %v1265, %v1279
      %v1302 = vmul.f32 %v1266, %v1279
      %v1303 = vmul.f32 %v1267, %v1279
      %v1304 = vmul.f32 %v1268, %v1279
      %v1305 = vmul.f32 %v1269, %v1279
      %v1306 = vmul.f32 %v1270, %v1279
      %v1307 = vmul.f32 %v1271, %v1279
      %v1308 = vmul.f32 %v1272, %v1279
      %v1309 = vmul.f32 %v1273, %v1279
      %v1310 = vmul.f32 %v1274, %v1279
      %v1311 = vmul.f32 %v1275, %v1279
      %v1312 = vadd.f32 %v1211, %v1280
      %v1313 = vadd.f32 %v1212, %v1281
      %v1314 = vadd.f32 %v1213, %v1282
      %v1315 = vadd.f32 %v1214, %v1283
      %v1316 = vadd.f32 %v1215, %v1284
      %v1317 = vadd.f32 %v1216, %v1285
      %v1318 = vadd.f32 %v1217, %v1286
      %v1319 = vadd.f32 %v1218, %v1287
      %v1320 = vadd.f32 %v1219, %v1288
      %v1321 = vadd.f32 %v1220, %v1289
      %v1322 = vadd.f32 %v1221, %v1290
      %v1323 = vadd.f32 %v1222, %v1291
      %v1324 = vadd.f32 %v1223, %v1292
      %v1325 = vadd.f32 %v1224, %v1293
      %v1326 = vadd.f32 %v1225, %v1294
      %v1327 = vadd.f32 %v1226, %v1295
      %v1328 = vadd.f32 %v1227, %v1296
      %v1329 = vadd.f32 %v1228, %v1297
      %v1330 = vadd.f32 %v1229, %v1298
      %v1331 = vadd.f32 %v1230, %v1299
      %v1332 = vadd.f32 %v1231, %v1300
      %v1333 = vadd.f32 %v1232, %v1301
      %v1334 = vadd.f32 %v1233, %v1302
      %v1335 = vadd.f32 %v1234, %v1303
      %v1336 = vadd.f32 %v1235, %v1304
      %v1337 = vadd.f32 %v1236, %v1305
      %v1338 = vadd.f32 %v1237, %v1306
      %v1339 = vadd.f32 %v1238, %v1307
      %v1340 = vadd.f32 %v1239, %v1308
      %v1341 = vadd.f32 %v1240, %v1309
      %v1342 = vadd.f32 %v1241, %v1310
      %v1343 = vadd.f32 %v1242, %v1311
      %v1344 = vld [vmem:[%s295 + $0x6] sm:$0x1]
      %s1345 = scalar_lea.vmem [#allocation2], 48
      %v1346 = vld [vmem:[%s1345] sm:$0xff]
      %v1347 = vld [vmem:[%s1345 + $0x8] sm:$0xff]
      %v1348 = vld [vmem:[%s1345 + $0x18] sm:$0xff]
      %v1349 = vld [vmem:[%s1345 + $0x20] sm:$0xff]
      %v1350 = vld [vmem:[%s1345 + $0x30] sm:$0xff]
      %v1351 = vld [vmem:[%s1345 + $0x38] sm:$0xff]
      %v1352 = vld [vmem:[%s1345 + $0x48] sm:$0xff]
      %v1353 = vld [vmem:[%s1345 + $0x50] sm:$0xff]
      %v1354 = vld [vmem:[%s1345 + $0x60] sm:$0xff]
      %v1355 = vld [vmem:[%s1345 + $0x68] sm:$0xff]
      %v1356 = vld [vmem:[%s1345 + $0x78] sm:$0xff]
      %v1357 = vld [vmem:[%s1345 + $0x80] sm:$0xff]
      %v1358 = vld [vmem:[%s1345 + $0x90] sm:$0xff]
      %v1359 = vld [vmem:[%s1345 + $0x98] sm:$0xff]
      %v1360 = vld [vmem:[%s1345 + $0xa8] sm:$0xff]
      %v1361 = vld [vmem:[%s1345 + $0xb0] sm:$0xff]
      %v1362 = vld [vmem:[%s1345 + $0xc0] sm:$0xff]
      %v1363 = vld [vmem:[%s1345 + $0xc8] sm:$0xff]
      %v1364 = vld [vmem:[%s1345 + $0xd8] sm:$0xff]
      %v1365 = vld [vmem:[%s1345 + $0xe0] sm:$0xff]
      %v1366 = vld [vmem:[%s1345 + $0xf0] sm:$0xff]
      %v1367 = vld [vmem:[%s1345 + $0xf8] sm:$0xff]
      %v1368 = vld [vmem:[%s1345 + $0x108] sm:$0xff]
      %v1369 = vld [vmem:[%s1345 + $0x110] sm:$0xff]
      %v1370 = vld [vmem:[%s1345 + $0x120] sm:$0xff]
      %v1371 = vld [vmem:[%s1345 + $0x128] sm:$0xff]
      %v1372 = vld [vmem:[%s1345 + $0x138] sm:$0xff]
      %v1373 = vld [vmem:[%s1345 + $0x140] sm:$0xff]
      %v1374 = vld [vmem:[%s1345 + $0x150] sm:$0xff]
      %v1375 = vld [vmem:[%s1345 + $0x158] sm:$0xff]
      %v1376 = vld [vmem:[%s1345 + $0x168] sm:$0xff]
      %v1377 = vld [vmem:[%s1345 + $0x170] sm:$0xff]
      %v1378 = vlaneseq
      %v1379 = vshrl.u32 %v1378, 7
      %v1380 = vsub.s32 0, %v1379
      %v1381 = vrot.slane %v1344, %v1380
      %v1382 = vmul.f32 %v1346, %v1381
      %v1383 = vmul.f32 %v1347, %v1381
      %v1384 = vmul.f32 %v1348, %v1381
      %v1385 = vmul.f32 %v1349, %v1381
      %v1386 = vmul.f32 %v1350, %v1381
      %v1387 = vmul.f32 %v1351, %v1381
      %v1388 = vmul.f32 %v1352, %v1381
      %v1389 = vmul.f32 %v1353, %v1381
      %v1390 = vmul.f32 %v1354, %v1381
      %v1391 = vmul.f32 %v1355, %v1381
      %v1392 = vmul.f32 %v1356, %v1381
      %v1393 = vmul.f32 %v1357, %v1381
      %v1394 = vmul.f32 %v1358, %v1381
      %v1395 = vmul.f32 %v1359, %v1381
      %v1396 = vmul.f32 %v1360, %v1381
      %v1397 = vmul.f32 %v1361, %v1381
      %v1398 = vmul.f32 %v1362, %v1381
      %v1399 = vmul.f32 %v1363, %v1381
      %v1400 = vmul.f32 %v1364, %v1381
      %v1401 = vmul.f32 %v1365, %v1381
      %v1402 = vmul.f32 %v1366, %v1381
      %v1403 = vmul.f32 %v1367, %v1381
      %v1404 = vmul.f32 %v1368, %v1381
      %v1405 = vmul.f32 %v1369, %v1381
      %v1406 = vmul.f32 %v1370, %v1381
      %v1407 = vmul.f32 %v1371, %v1381
      %v1408 = vmul.f32 %v1372, %v1381
      %v1409 = vmul.f32 %v1373, %v1381
      %v1410 = vmul.f32 %v1374, %v1381
      %v1411 = vmul.f32 %v1375, %v1381
      %v1412 = vmul.f32 %v1376, %v1381
      %v1413 = vmul.f32 %v1377, %v1381
      %v1414 = vadd.f32 %v1312, %v1382
      %v1415 = vadd.f32 %v1313, %v1383
      %v1416 = vadd.f32 %v1314, %v1384
      %v1417 = vadd.f32 %v1315, %v1385
      %v1418 = vadd.f32 %v1316, %v1386
      %v1419 = vadd.f32 %v1317, %v1387
      %v1420 = vadd.f32 %v1318, %v1388
      %v1421 = vadd.f32 %v1319, %v1389
      %v1422 = vadd.f32 %v1320, %v1390
      %v1423 = vadd.f32 %v1321, %v1391
      %v1424 = vadd.f32 %v1322, %v1392
      %v1425 = vadd.f32 %v1323, %v1393
      %v1426 = vadd.f32 %v1324, %v1394
      %v1427 = vadd.f32 %v1325, %v1395
      %v1428 = vadd.f32 %v1326, %v1396
      %v1429 = vadd.f32 %v1327, %v1397
      %v1430 = vadd.f32 %v1328, %v1398
      %v1431 = vadd.f32 %v1329, %v1399
      %v1432 = vadd.f32 %v1330, %v1400
      %v1433 = vadd.f32 %v1331, %v1401
      %v1434 = vadd.f32 %v1332, %v1402
      %v1435 = vadd.f32 %v1333, %v1403
      %v1436 = vadd.f32 %v1334, %v1404
      %v1437 = vadd.f32 %v1335, %v1405
      %v1438 = vadd.f32 %v1336, %v1406
      %v1439 = vadd.f32 %v1337, %v1407
      %v1440 = vadd.f32 %v1338, %v1408
      %v1441 = vadd.f32 %v1339, %v1409
      %v1442 = vadd.f32 %v1340, %v1410
      %v1443 = vadd.f32 %v1341, %v1411
      %v1444 = vadd.f32 %v1342, %v1412
      %v1445 = vadd.f32 %v1343, %v1413
      %v1446 = vld [vmem:[%s295 + $0x7] sm:$0x1]
      %v1447 = vld [vmem:[%s1345 + $0x1] sm:$0xff]
      %v1448 = vld [vmem:[%s1345 + $0x9] sm:$0xff]
      %v1449 = vld [vmem:[%s1345 + $0x19] sm:$0xff]
      %v1450 = vld [vmem:[%s1345 + $0x21] sm:$0xff]
      %v1451 = vld [vmem:[%s1345 + $0x31] sm:$0xff]
      %v1452 = vld [vmem:[%s1345 + $0x39] sm:$0xff]
      %v1453 = vld [vmem:[%s1345 + $0x49] sm:$0xff]
      %v1454 = vld [vmem:[%s1345 + $0x51] sm:$0xff]
      %v1455 = vld [vmem:[%s1345 + $0x61] sm:$0xff]
      %v1456 = vld [vmem:[%s1345 + $0x69] sm:$0xff]
      %v1457 = vld [vmem:[%s1345 + $0x79] sm:$0xff]
      %v1458 = vld [vmem:[%s1345 + $0x81] sm:$0xff]
      %v1459 = vld [vmem:[%s1345 + $0x91] sm:$0xff]
      %v1460 = vld [vmem:[%s1345 + $0x99] sm:$0xff]
      %v1461 = vld [vmem:[%s1345 + $0xa9] sm:$0xff]
      %v1462 = vld [vmem:[%s1345 + $0xb1] sm:$0xff]
      %v1463 = vld [vmem:[%s1345 + $0xc1] sm:$0xff]
      %v1464 = vld [vmem:[%s1345 + $0xc9] sm:$0xff]
      %v1465 = vld [vmem:[%s1345 + $0xd9] sm:$0xff]
      %v1466 = vld [vmem:[%s1345 + $0xe1] sm:$0xff]
      %v1467 = vld [vmem:[%s1345 + $0xf1] sm:$0xff]
      %v1468 = vld [vmem:[%s1345 + $0xf9] sm:$0xff]
      %v1469 = vld [vmem:[%s1345 + $0x109] sm:$0xff]
      %v1470 = vld [vmem:[%s1345 + $0x111] sm:$0xff]
      %v1471 = vld [vmem:[%s1345 + $0x121] sm:$0xff]
      %v1472 = vld [vmem:[%s1345 + $0x129] sm:$0xff]
      %v1473 = vld [vmem:[%s1345 + $0x139] sm:$0xff]
      %v1474 = vld [vmem:[%s1345 + $0x141] sm:$0xff]
      %v1475 = vld [vmem:[%s1345 + $0x151] sm:$0xff]
      %v1476 = vld [vmem:[%s1345 + $0x159] sm:$0xff]
      %v1477 = vld [vmem:[%s1345 + $0x169] sm:$0xff]
      %v1478 = vld [vmem:[%s1345 + $0x171] sm:$0xff]
      %v1479 = vlaneseq
      %v1480 = vshrl.u32 %v1479, 7
      %v1481 = vsub.s32 0, %v1480
      %v1482 = vrot.slane %v1446, %v1481
      %v1483 = vmul.f32 %v1447, %v1482
      %v1484 = vmul.f32 %v1448, %v1482
      %v1485 = vmul.f32 %v1449, %v1482
      %v1486 = vmul.f32 %v1450, %v1482
      %v1487 = vmul.f32 %v1451, %v1482
      %v1488 = vmul.f32 %v1452, %v1482
      %v1489 = vmul.f32 %v1453, %v1482
      %v1490 = vmul.f32 %v1454, %v1482
      %v1491 = vmul.f32 %v1455, %v1482
      %v1492 = vmul.f32 %v1456, %v1482
      %v1493 = vmul.f32 %v1457, %v1482
      %v1494 = vmul.f32 %v1458, %v1482
      %v1495 = vmul.f32 %v1459, %v1482
      %v1496 = vmul.f32 %v1460, %v1482
      %v1497 = vmul.f32 %v1461, %v1482
      %v1498 = vmul.f32 %v1462, %v1482
      %v1499 = vmul.f32 %v1463, %v1482
      %v1500 = vmul.f32 %v1464, %v1482
      %v1501 = vmul.f32 %v1465, %v1482
      %v1502 = vmul.f32 %v1466, %v1482
      %v1503 = vmul.f32 %v1467, %v1482
      %v1504 = vmul.f32 %v1468, %v1482
      %v1505 = vmul.f32 %v1469, %v1482
      %v1506 = vmul.f32 %v1470, %v1482
      %v1507 = vmul.f32 %v1471, %v1482
      %v1508 = vmul.f32 %v1472, %v1482
      %v1509 = vmul.f32 %v1473, %v1482
      %v1510 = vmul.f32 %v1474, %v1482
      %v1511 = vmul.f32 %v1475, %v1482
      %v1512 = vmul.f32 %v1476, %v1482
      %v1513 = vmul.f32 %v1477, %v1482
      %v1514 = vmul.f32 %v1478, %v1482
      %v1515 = vadd.f32 %v1414, %v1483
      %v1516 = vadd.f32 %v1415, %v1484
      %v1517 = vadd.f32 %v1416, %v1485
      %v1518 = vadd.f32 %v1417, %v1486
      %v1519 = vadd.f32 %v1418, %v1487
      %v1520 = vadd.f32 %v1419, %v1488
      %v1521 = vadd.f32 %v1420, %v1489
      %v1522 = vadd.f32 %v1421, %v1490
      %v1523 = vadd.f32 %v1422, %v1491
      %v1524 = vadd.f32 %v1423, %v1492
      %v1525 = vadd.f32 %v1424, %v1493
      %v1526 = vadd.f32 %v1425, %v1494
      %v1527 = vadd.f32 %v1426, %v1495
      %v1528 = vadd.f32 %v1427, %v1496
      %v1529 = vadd.f32 %v1428, %v1497
      %v1530 = vadd.f32 %v1429, %v1498
      %v1531 = vadd.f32 %v1430, %v1499
      %v1532 = vadd.f32 %v1431, %v1500
      %v1533 = vadd.f32 %v1432, %v1501
      %v1534 = vadd.f32 %v1433, %v1502
      %v1535 = vadd.f32 %v1434, %v1503
      %v1536 = vadd.f32 %v1435, %v1504
      %v1537 = vadd.f32 %v1436, %v1505
      %v1538 = vadd.f32 %v1437, %v1506
      %v1539 = vadd.f32 %v1438, %v1507
      %v1540 = vadd.f32 %v1439, %v1508
      %v1541 = vadd.f32 %v1440, %v1509
      %v1542 = vadd.f32 %v1441, %v1510
      %v1543 = vadd.f32 %v1442, %v1511
      %v1544 = vadd.f32 %v1443, %v1512
      %v1545 = vadd.f32 %v1444, %v1513
      %v1546 = vadd.f32 %v1445, %v1514
      %v1547 = vld [vmem:[%s295 + $0x8] sm:$0x1]
      %v1548 = vld [vmem:[%s1345 + $0x2] sm:$0xff]
      %v1549 = vld [vmem:[%s1345 + $0xa] sm:$0xff]
      %v1550 = vld [vmem:[%s1345 + $0x1a] sm:$0xff]
      %v1551 = vld [vmem:[%s1345 + $0x22] sm:$0xff]
      %v1552 = vld [vmem:[%s1345 + $0x32] sm:$0xff]
      %v1553 = vld [vmem:[%s1345 + $0x3a] sm:$0xff]
      %v1554 = vld [vmem:[%s1345 + $0x4a] sm:$0xff]
      %v1555 = vld [vmem:[%s1345 + $0x52] sm:$0xff]
      %v1556 = vld [vmem:[%s1345 + $0x62] sm:$0xff]
      %v1557 = vld [vmem:[%s1345 + $0x6a] sm:$0xff]
      %v1558 = vld [vmem:[%s1345 + $0x7a] sm:$0xff]
      %v1559 = vld [vmem:[%s1345 + $0x82] sm:$0xff]
      %v1560 = vld [vmem:[%s1345 + $0x92] sm:$0xff]
      %v1561 = vld [vmem:[%s1345 + $0x9a] sm:$0xff]
      %v1562 = vld [vmem:[%s1345 + $0xaa] sm:$0xff]
      %v1563 = vld [vmem:[%s1345 + $0xb2] sm:$0xff]
      %v1564 = vld [vmem:[%s1345 + $0xc2] sm:$0xff]
      %v1565 = vld [vmem:[%s1345 + $0xca] sm:$0xff]
      %v1566 = vld [vmem:[%s1345 + $0xda] sm:$0xff]
      %v1567 = vld [vmem:[%s1345 + $0xe2] sm:$0xff]
      %v1568 = vld [vmem:[%s1345 + $0xf2] sm:$0xff]
      %v1569 = vld [vmem:[%s1345 + $0xfa] sm:$0xff]
      %v1570 = vld [vmem:[%s1345 + $0x10a] sm:$0xff]
      %v1571 = vld [vmem:[%s1345 + $0x112] sm:$0xff]
      %v1572 = vld [vmem:[%s1345 + $0x122] sm:$0xff]
      %v1573 = vld [vmem:[%s1345 + $0x12a] sm:$0xff]
      %v1574 = vld [vmem:[%s1345 + $0x13a] sm:$0xff]
      %v1575 = vld [vmem:[%s1345 + $0x142] sm:$0xff]
      %v1576 = vld [vmem:[%s1345 + $0x152] sm:$0xff]
      %v1577 = vld [vmem:[%s1345 + $0x15a] sm:$0xff]
      %v1578 = vld [vmem:[%s1345 + $0x16a] sm:$0xff]
      %v1579 = vld [vmem:[%s1345 + $0x172] sm:$0xff]
      %v1580 = vlaneseq
      %v1581 = vshrl.u32 %v1580, 7
      %v1582 = vsub.s32 0, %v1581
      %v1583 = vrot.slane %v1547, %v1582
      %v1584 = vmul.f32 %v1548, %v1583
      %v1585 = vmul.f32 %v1549, %v1583
      %v1586 = vmul.f32 %v1550, %v1583
      %v1587 = vmul.f32 %v1551, %v1583
      %v1588 = vmul.f32 %v1552, %v1583
      %v1589 = vmul.f32 %v1553, %v1583
      %v1590 = vmul.f32 %v1554, %v1583
      %v1591 = vmul.f32 %v1555, %v1583
      %v1592 = vmul.f32 %v1556, %v1583
      %v1593 = vmul.f32 %v1557, %v1583
      %v1594 = vmul.f32 %v1558, %v1583
      %v1595 = vmul.f32 %v1559, %v1583
      %v1596 = vmul.f32 %v1560, %v1583
      %v1597 = vmul.f32 %v1561, %v1583
      %v1598 = vmul.f32 %v1562, %v1583
      %v1599 = vmul.f32 %v1563, %v1583
      %v1600 = vmul.f32 %v1564, %v1583
      %v1601 = vmul.f32 %v1565, %v1583
      %v1602 = vmul.f32 %v1566, %v1583
      %v1603 = vmul.f32 %v1567, %v1583
      %v1604 = vmul.f32 %v1568, %v1583
      %v1605 = vmul.f32 %v1569, %v1583
      %v1606 = vmul.f32 %v1570, %v1583
      %v1607 = vmul.f32 %v1571, %v1583
      %v1608 = vmul.f32 %v1572, %v1583
      %v1609 = vmul.f32 %v1573, %v1583
      %v1610 = vmul.f32 %v1574, %v1583
      %v1611 = vmul.f32 %v1575, %v1583
      %v1612 = vmul.f32 %v1576, %v1583
      %v1613 = vmul.f32 %v1577, %v1583
      %v1614 = vmul.f32 %v1578, %v1583
      %v1615 = vmul.f32 %v1579, %v1583
      %v1616 = vadd.f32 %v1515, %v1584
      %v1617 = vadd.f32 %v1516, %v1585
      %v1618 = vadd.f32 %v1517, %v1586
      %v1619 = vadd.f32 %v1518, %v1587
      %v1620 = vadd.f32 %v1519, %v1588
      %v1621 = vadd.f32 %v1520, %v1589
      %v1622 = vadd.f32 %v1521, %v1590
      %v1623 = vadd.f32 %v1522, %v1591
      %v1624 = vadd.f32 %v1523, %v1592
      %v1625 = vadd.f32 %v1524, %v1593
      %v1626 = vadd.f32 %v1525, %v1594
      %v1627 = vadd.f32 %v1526, %v1595
      %v1628 = vadd.f32 %v1527, %v1596
      %v1629 = vadd.f32 %v1528, %v1597
      %v1630 = vadd.f32 %v1529, %v1598
      %v1631 = vadd.f32 %v1530, %v1599
      %v1632 = vadd.f32 %v1531, %v1600
      %v1633 = vadd.f32 %v1532, %v1601
      %v1634 = vadd.f32 %v1533, %v1602
      %v1635 = vadd.f32 %v1534, %v1603
      %v1636 = vadd.f32 %v1535, %v1604
      %v1637 = vadd.f32 %v1536, %v1605
      %v1638 = vadd.f32 %v1537, %v1606
      %v1639 = vadd.f32 %v1538, %v1607
      %v1640 = vadd.f32 %v1539, %v1608
      %v1641 = vadd.f32 %v1540, %v1609
      %v1642 = vadd.f32 %v1541, %v1610
      %v1643 = vadd.f32 %v1542, %v1611
      %v1644 = vadd.f32 %v1543, %v1612
      %v1645 = vadd.f32 %v1544, %v1613
      %v1646 = vadd.f32 %v1545, %v1614
      %v1647 = vadd.f32 %v1546, %v1615
      %v1648 = vmax.f32 %v1616, 0.0
      %v1649 = vmax.f32 %v1617, 0.0
      %v1650 = vmax.f32 %v1618, 0.0
      %v1651 = vmax.f32 %v1619, 0.0
      %v1652 = vmax.f32 %v1620, 0.0
      %v1653 = vmax.f32 %v1621, 0.0
      %v1654 = vmax.f32 %v1622, 0.0
      %v1655 = vmax.f32 %v1623, 0.0
      %v1656 = vmax.f32 %v1624, 0.0
      %v1657 = vmax.f32 %v1625, 0.0
      %v1658 = vmax.f32 %v1626, 0.0
      %v1659 = vmax.f32 %v1627, 0.0
      %v1660 = vmax.f32 %v1628, 0.0
      %v1661 = vmax.f32 %v1629, 0.0
      %v1662 = vmax.f32 %v1630, 0.0
      %v1663 = vmax.f32 %v1631, 0.0
      %v1664 = vmax.f32 %v1632, 0.0
      %v1665 = vmax.f32 %v1633, 0.0
      %v1666 = vmax.f32 %v1634, 0.0
      %v1667 = vmax.f32 %v1635, 0.0
      %v1668 = vmax.f32 %v1636, 0.0
      %v1669 = vmax.f32 %v1637, 0.0
      %v1670 = vmax.f32 %v1638, 0.0
      %v1671 = vmax.f32 %v1639, 0.0
      %v1672 = vmax.f32 %v1640, 0.0
      %v1673 = vmax.f32 %v1641, 0.0
      %v1674 = vmax.f32 %v1642, 0.0
      %v1675 = vmax.f32 %v1643, 0.0
      %v1676 = vmax.f32 %v1644, 0.0
      %v1677 = vmax.f32 %v1645, 0.0
      %v1678 = vmax.f32 %v1646, 0.0
      %v1679 = vmax.f32 %v1647, 0.0
      %v1680 = vmin.f32 %v1648, 6.0
      %v1681 = vmin.f32 %v1649, 6.0
      %v1682 = vmin.f32 %v1650, 6.0
      %v1683 = vmin.f32 %v1651, 6.0
      %v1684 = vmin.f32 %v1652, 6.0
      %v1685 = vmin.f32 %v1653, 6.0
      %v1686 = vmin.f32 %v1654, 6.0
      %v1687 = vmin.f32 %v1655, 6.0
      %v1688 = vmin.f32 %v1656, 6.0
      %v1689 = vmin.f32 %v1657, 6.0
      %v1690 = vmin.f32 %v1658, 6.0
      %v1691 = vmin.f32 %v1659, 6.0
      %v1692 = vmin.f32 %v1660, 6.0
      %v1693 = vmin.f32 %v1661, 6.0
      %v1694 = vmin.f32 %v1662, 6.0
      %v1695 = vmin.f32 %v1663, 6.0
      %v1696 = vmin.f32 %v1664, 6.0
      %v1697 = vmin.f32 %v1665, 6.0
      %v1698 = vmin.f32 %v1666, 6.0
      %v1699 = vmin.f32 %v1667, 6.0
      %v1700 = vmin.f32 %v1668, 6.0
      %v1701 = vmin.f32 %v1669, 6.0
      %v1702 = vmin.f32 %v1670, 6.0
      %v1703 = vmin.f32 %v1671, 6.0
      %v1704 = vmin.f32 %v1672, 6.0
      %v1705 = vmin.f32 %v1673, 6.0
      %v1706 = vmin.f32 %v1674, 6.0
      %v1707 = vmin.f32 %v1675, 6.0
      %v1708 = vmin.f32 %v1676, 6.0
      %v1709 = vmin.f32 %v1677, 6.0
      %v1710 = vmin.f32 %v1678, 6.0
      %v1711 = vmin.f32 %v1679, 6.0
      %v1712 = vpack.c.bf16 %v1681, %v1680
      %v1713 = vpack.c.bf16 %v1683, %v1682
      %v1714 = vpack.c.bf16 %v1685, %v1684
      %v1715 = vpack.c.bf16 %v1687, %v1686
      %v1716 = vpack.c.bf16 %v1689, %v1688
      %v1717 = vpack.c.bf16 %v1691, %v1690
      %v1718 = vpack.c.bf16 %v1693, %v1692
      %v1719 = vpack.c.bf16 %v1695, %v1694
      %v1720 = vpack.c.bf16 %v1697, %v1696
      %v1721 = vpack.c.bf16 %v1699, %v1698
      %v1722 = vpack.c.bf16 %v1701, %v1700
      %v1723 = vpack.c.bf16 %v1703, %v1702
      %v1724 = vpack.c.bf16 %v1705, %v1704
      %v1725 = vpack.c.bf16 %v1707, %v1706
      %v1726 = vpack.c.bf16 %v1709, %v1708
      %v1727 = vpack.c.bf16 %v1711, %v1710
      %v1744 = vunpack.c.l.b16 %v1712
      %v1745 = vunpack.c.h.b16 %v1712
      %v1746 = vunpack.c.l.b16 %v1713
      %v1747 = vunpack.c.h.b16 %v1713
      %v1748 = vunpack.c.l.b16 %v1714
      %v1749 = vunpack.c.h.b16 %v1714
      %v1750 = vunpack.c.l.b16 %v1715
      %v1751 = vunpack.c.h.b16 %v1715
      %v1752 = vunpack.c.l.b16 %v1716
      %v1753 = vunpack.c.h.b16 %v1716
      %v1754 = vunpack.c.l.b16 %v1717
      %v1755 = vunpack.c.h.b16 %v1717
      %v1756 = vunpack.c.l.b16 %v1718
      %v1757 = vunpack.c.h.b16 %v1718
      %v1758 = vunpack.c.l.b16 %v1719
      %v1759 = vunpack.c.h.b16 %v1719
      %v1760 = vunpack.c.l.b16 %v1720
      %v1761 = vunpack.c.h.b16 %v1720
      %v1762 = vunpack.c.l.b16 %v1721
      %v1763 = vunpack.c.h.b16 %v1721
      %v1764 = vunpack.c.l.b16 %v1722
      %v1765 = vunpack.c.h.b16 %v1722
      %v1766 = vunpack.c.l.b16 %v1723
      %v1767 = vunpack.c.h.b16 %v1723
      %v1768 = vunpack.c.l.b16 %v1724
      %v1769 = vunpack.c.h.b16 %v1724
      %v1770 = vunpack.c.l.b16 %v1725
      %v1771 = vunpack.c.h.b16 %v1725
      %v1772 = vunpack.c.l.b16 %v1726
      %v1773 = vunpack.c.h.b16 %v1726
      %v1774 = vunpack.c.l.b16 %v1727
      %v1775 = vunpack.c.h.b16 %v1727
      %v1776 = vpack.c.b16 %v1744, %v1744
      %v1777 = vpack.c.b16 %v1745, %v1745
      %v1778 = vpack.c.b16 %v1746, %v1746
      %v1779 = vpack.c.b16 %v1747, %v1747
      %v1780 = vpack.c.b16 %v1748, %v1748
      %v1781 = vpack.c.b16 %v1749, %v1749
      %v1782 = vpack.c.b16 %v1750, %v1750
      %v1783 = vpack.c.b16 %v1751, %v1751
      %v1784 = vpack.c.b16 %v1752, %v1752
      %v1785 = vpack.c.b16 %v1753, %v1753
      %v1786 = vpack.c.b16 %v1754, %v1754
      %v1787 = vpack.c.b16 %v1755, %v1755
      %v1788 = vpack.c.b16 %v1756, %v1756
      %v1789 = vpack.c.b16 %v1757, %v1757
      %v1790 = vpack.c.b16 %v1758, %v1758
      %v1791 = vpack.c.b16 %v1759, %v1759
      %v1792 = vpack.c.b16 %v1760, %v1760
      %v1793 = vpack.c.b16 %v1761, %v1761
      %v1794 = vpack.c.b16 %v1762, %v1762
      %v1795 = vpack.c.b16 %v1763, %v1763
      %v1796 = vpack.c.b16 %v1764, %v1764
      %v1797 = vpack.c.b16 %v1765, %v1765
      %v1798 = vpack.c.b16 %v1766, %v1766
      %v1799 = vpack.c.b16 %v1767, %v1767
      %v1800 = vpack.c.b16 %v1768, %v1768
      %v1801 = vpack.c.b16 %v1769, %v1769
      %v1802 = vpack.c.b16 %v1770, %v1770
      %v1803 = vpack.c.b16 %v1771, %v1771
      %v1804 = vpack.c.b16 %v1772, %v1772
      %v1805 = vpack.c.b16 %v1773, %v1773
      %v1806 = vpack.c.b16 %v1774, %v1774
      %v1807 = vpack.c.b16 %v1775, %v1775
      %vm1840 = vcmask 60416
      %1841 = vst.msk [vmem:[%s306] sm:$0xf] %vm1840, %v1776
      %1842 = vst.msk [vmem:[%s306 + $0x4] sm:$0xf] %vm1840, %v1777
      %1843 = vst.msk [vmem:[%s306 + $0x8] sm:$0xf] %vm1840, %v1778
      %1844 = vst.msk [vmem:[%s306 + $0xc] sm:$0xf] %vm1840, %v1779
      %1845 = vst.msk [vmem:[%s306 + $0x10] sm:$0xf] %vm1840, %v1780
      %1846 = vst.msk [vmem:[%s306 + $0x14] sm:$0xf] %vm1840, %v1781
      %1847 = vst.msk [vmem:[%s306 + $0x18] sm:$0xf] %vm1840, %v1782
      %1848 = vst.msk [vmem:[%s306 + $0x1c] sm:$0xf] %vm1840, %v1783
      %1849 = vst.msk [vmem:[%s306 + $0x20] sm:$0xf] %vm1840, %v1784
      %1850 = vst.msk [vmem:[%s306 + $0x24] sm:$0xf] %vm1840, %v1785
      %1851 = vst.msk [vmem:[%s306 + $0x28] sm:$0xf] %vm1840, %v1786
      %1852 = vst.msk [vmem:[%s306 + $0x2c] sm:$0xf] %vm1840, %v1787
      %1853 = vst.msk [vmem:[%s306 + $0x30] sm:$0xf] %vm1840, %v1788
      %1854 = vst.msk [vmem:[%s306 + $0x34] sm:$0xf] %vm1840, %v1789
      %1855 = vst.msk [vmem:[%s306 + $0x38] sm:$0xf] %vm1840, %v1790
      %1856 = vst.msk [vmem:[%s306 + $0x3c] sm:$0xf] %vm1840, %v1791
      %1857 = vst.msk [vmem:[%s306 + $0x40] sm:$0xf] %vm1840, %v1792
      %1858 = vst.msk [vmem:[%s306 + $0x44] sm:$0xf] %vm1840, %v1793
      %1859 = vst.msk [vmem:[%s306 + $0x48] sm:$0xf] %vm1840, %v1794
      %1860 = vst.msk [vmem:[%s306 + $0x4c] sm:$0xf] %vm1840, %v1795
      %1861 = vst.msk [vmem:[%s306 + $0x50] sm:$0xf] %vm1840, %v1796
      %1862 = vst.msk [vmem:[%s306 + $0x54] sm:$0xf] %vm1840, %v1797
      %1863 = vst.msk [vmem:[%s306 + $0x58] sm:$0xf] %vm1840, %v1798
      %1864 = vst.msk [vmem:[%s306 + $0x5c] sm:$0xf] %vm1840, %v1799
      %1865 = vst.msk [vmem:[%s306 + $0x60] sm:$0xf] %vm1840, %v1800
      %1866 = vst.msk [vmem:[%s306 + $0x64] sm:$0xf] %vm1840, %v1801
      %1867 = vst.msk [vmem:[%s306 + $0x68] sm:$0xf] %vm1840, %v1802
      %1868 = vst.msk [vmem:[%s306 + $0x6c] sm:$0xf] %vm1840, %v1803
      %1869 = vst.msk [vmem:[%s306 + $0x70] sm:$0xf] %vm1840, %v1804
      %1870 = vst.msk [vmem:[%s306 + $0x74] sm:$0xf] %vm1840, %v1805
      %1871 = vst.msk [vmem:[%s306 + $0x78] sm:$0xf] %vm1840, %v1806
      %1872 = vst.msk [vmem:[%s306 + $0x7c] sm:$0xf] %vm1840, %v1807
      %p1873 = scmp.lt.s32.totalorder %s20, 1
      %s1874 = scalar_select %p1873, %s20, 1
      %p1875 = scmp.lt.s32.totalorder %s21, 0
      %s1876 = scalar_select %p1875, %s21, 0
      %s1877 = smul.addr %s1874, 32
      %s1878 = sadd.s32 %s1876, %s1877
      %s1879 = smul.addr %s1878, 4
      %s1880 = scalar_lea.vmem %s5, %s1879
      // Predicated region
      $region41: #{tpu_custom_call.1} parent=39 // pred_check
        %p1881 = pneg %p178
      $region42: #{tpu_custom_call.1} parent=39 // pred_check_branch
        %1883 = sbr.rel (%p1881) target = $region44
      $region43: #{tpu_custom_call.1} parent=39 // pred_region
        _
      $region44: #{tpu_custom_call.1} parent=39 // pred_fallthru
        _
    $region40: #{tpu_custom_call.1} parent=5 // pred_fallthru
      _
    %p1884 = scmp.le.s32.totalorder 2, %s11
    // Predicated region
    $region45: #{tpu_custom_call.1} parent=5 // pred_check
      %p1885 = pneg %p1884
    $region46: #{tpu_custom_call.1} parent=5 // pred_check_branch
      %1887 = sbr.rel (%p1885) target = $region48
    $region47: #{tpu_custom_call.1} parent=5 // pred_region
      %s1888 = ssub.s32 %s11, 2
      // Predicated region
      $region49: #{tpu_custom_call.1} parent=47 // pred_check
        %p1889 = pneg %p184
      $region50: #{tpu_custom_call.1} parent=47 // pred_check_branch
        %1891 = sbr.rel (%p1889) target = $region52
      $region51: #{tpu_custom_call.1} parent=47 // pred_region
        %p1892 = scmp.lt.s32.totalorder %s22, 1
        %s1893 = scalar_select %p1892, %s22, 1
        %p1894 = scmp.lt.s32.totalorder %s23, 0
        %s1895 = scalar_select %p1894, %s23, 0
        %s1896 = smul.addr %s1893, 32
        %s1897 = sadd.s32 %s1895, %s1896
        %s1898 = smul.addr %s1897, 4
        %s1899 = scalar_lea.vmem %s5, %s1898
      $region52: #{tpu_custom_call.1} parent=47 // pred_fallthru
        _
    $region48: #{tpu_custom_call.1} parent=5 // pred_fallthru
      _
  $region6: #{tpu_custom_call.1} parent=0 // loop_footer
    %s15 = sadd.s32 1, %s11
  $region7: #{tpu_custom_call.1} parent=0 // loop_footer_branch
    %10 = sbr.rel target = $region3
  $region8: #{tpu_custom_call.1} parent=0 // loop_exit
    _

</llo_original>
